<compile_context>
chip_gen: v7x
topology: tpu7x:2x2x1
jax: 0.10.0
libtpu: 0.0.40
codegen_flags: <defaults>
</compile_context>

<pallas_src>
import numpy as np
import jax
import jax.numpy as jnp
from jax import lax
from jax.experimental import pallas as pl
from jax.experimental.pallas import tpu as pltpu

L = 3                      # number of Fourier levels in the head
R_FEATS = 2 * L * 9        # 54
ENC_PAD = 64               # 54 real encoding rows + 10 zero rows (8-aligned)
N_HIDDEN = 256
FEAT_DIM = 2048            # resnet50 layer4 output channels
N_TILE_MAX = 2048          # max query tile on the lane axis (tunable)
COL_SLOTS = 8              # packed per-batch column slab width


# ----------------------------------------------------------------------------
# Pallas kernel: IPDF head (fused Fourier matmul + MLP), per (b, n-tile)
# ----------------------------------------------------------------------------
def ipdf_head_kernel(cols_ref, enc_ref, rwf_ref, w1_ref, w2_ref, w3_ref,
                     w4_ref, out_ref):
    # Transposed layout: hidden (256) on sublanes, queries (NT) on lanes, so
    # every store is lane-dense and the final linear emits (1, NT).
    # Packed per-batch column slab: slot 0 = img_W@feat + img_b + R_b,
    # slots 1..3 = b1..b3, slot 4 = b4 (broadcast), slots 5..7 unused.
    base = cols_ref[0, :, 0:1]                        # (256, 1) f32
    b1 = cols_ref[0, :, 1:2]
    b2 = cols_ref[0, :, 2:3]
    b3 = cols_ref[0, :, 3:4]
    b4 = cols_ref[0, 0:1, 4:5]                        # (1, 1) f32

    # Fourier branch fused into a single bf16 K=64 MXU matmul: enc rows are
    # [sin(2^l*pi*R); cos(2^l*pi*R)]_l zero-padded 54->64, rwf is the matching
    # zero-padded R_W^T.  (Replaces six serial K=9 f32 dots.)
    x = base + jnp.dot(rwf_ref[...], enc_ref[0],
                       preferred_element_type=jnp.float32)    # (256, NT) f32

    # MLP with bf16 weights/activations and f32 MXU accumulation; ReLU runs on
    # packed bf16 vregs (relu(round(x)) == round(relu(x)) for round-to-nearest).
    h = jnp.maximum(x.astype(jnp.bfloat16), 0.0)              # (256, NT) bf16
    h = jnp.maximum((jnp.dot(w1_ref[...], h, preferred_element_type=jnp.float32)
                     + b1).astype(jnp.bfloat16), 0.0)
    h = jnp.maximum((jnp.dot(w2_ref[...], h, preferred_element_type=jnp.float32)
                     + b2).astype(jnp.bfloat16), 0.0)
    h = jnp.maximum((jnp.dot(w3_ref[...], h, preferred_element_type=jnp.float32)
                     + b3).astype(jnp.bfloat16), 0.0)
    # TODO(synk): the M=1 W4 matmul could become a VPU multiply + sublane
    # reduction if profiling shows this near-empty MXU pass on the critical path.
    scores = jnp.dot(w4_ref[...], h,
                     preferred_element_type=jnp.float32) + b4  # (1, NT)
    out_ref[0] = scores                               # lane-dense (1, NT) store


def ipdf_head_pallas(feat, Rs, hp, *, n_tile_max=N_TILE_MAX):
    """feat: (B, FEAT_DIM); Rs: (B, N, 9) -> scaled softmax probs (B, N)."""
    B, N, _ = Rs.shape

    def rup(x, m):
        return ((x + m - 1) // m) * m

    # Query tile clamped to the (padded) query count; always a multiple of 256.
    n_tile = min(n_tile_max, rup(N, 256))
    n_pad = rup(N, n_tile)

    # Image branch hoisted out of the kernel: one well-shaped (B,2048)@(2048,256)
    # GEMM; both linear biases folded into the per-batch base column.
    base = jnp.dot(feat, hp["img_W"], precision=lax.Precision.HIGHEST) \
        + hp["img_b"] + hp["R_b"]                                    # (B, 256)

    # Packed per-batch column slab (one DMA stream instead of 5 skinny ones).
    cols = jnp.zeros((B, N_HIDDEN, COL_SLOTS), jnp.float32)
    cols = cols.at[:, :, 0].set(base)
    cols = cols.at[:, :, 1].set(hp["b1"])
    cols = cols.at[:, :, 2].set(hp["b2"])
    cols = cols.at[:, :, 3].set(hp["b3"])
    cols = cols.at[:, :, 4].set(hp["b4"][0])

    # Fourier encoding precomputed in the wrapper (tiny O(B*N*54) op), queries
    # on the lane axis, 54 feature rows zero-padded to 64, cast to bf16.
    parts = []
    for l in range(L):
        s = (2.0 ** l) * jnp.pi * Rs
        parts.append(jnp.sin(s))
        parts.append(jnp.cos(s))
    enc = jnp.concatenate(parts, axis=-1)                            # (B, N, 54)
    encT = jnp.transpose(enc, (0, 2, 1))                             # (B, 54, N)
    encT = jnp.pad(encT, ((0, 0), (0, ENC_PAD - R_FEATS), (0, n_pad - N)))
    encT = encT.astype(jnp.bfloat16)                                 # (B, 64, n_pad)

    # Fused, zero-padded R-weight and pre-transposed bf16 MLP weights.
    rwf = jnp.pad(hp["R_W"].T, ((0, 0), (0, ENC_PAD - R_FEATS)))
    rwf = rwf.astype(jnp.bfloat16)                                   # (256, 64)
    w1T = hp["W1"].T.astype(jnp.bfloat16)
    w2T = hp["W2"].T.astype(jnp.bfloat16)
    w3T = hp["W3"].T.astype(jnp.bfloat16)
    w4T = hp["W4"].T.astype(jnp.bfloat16)                            # (1, 256)
    # TODO(synk): on v7x, W1-W3 could be fp8(e4m3) with per-channel scales for
    # ~2x MXU rate; left in bf16 pending an accuracy check.

    def weight_spec(shape):
        # Grid-invariant weights: DMA'd once; single-buffer to avoid dead VMEM.
        idx_map = lambda b, n: (0,) * len(shape)
        try:
            return pl.BlockSpec(shape, idx_map, pipeline_mode=pl.Buffered(1))
        except (TypeError, AttributeError):
            return pl.BlockSpec(shape, idx_map)

    scores = pl.pallas_call(
        ipdf_head_kernel,
        out_shape=jax.ShapeDtypeStruct((B, 1, n_pad), jnp.float32),
        grid_spec=pltpu.PrefetchScalarGridSpec(
            num_scalar_prefetch=0,
            grid=(B, n_pad // n_tile),
            in_specs=[
                pl.BlockSpec((1, N_HIDDEN, COL_SLOTS),
                             lambda b, n: (b, 0, 0)),                # base/bias slab
                pl.BlockSpec((1, ENC_PAD, n_tile),
                             lambda b, n: (b, 0, n)),                # encoding tile
                weight_spec((N_HIDDEN, ENC_PAD)),                    # fused R_W^T
                weight_spec((N_HIDDEN, N_HIDDEN)),                   # W1^T
                weight_spec((N_HIDDEN, N_HIDDEN)),                   # W2^T
                weight_spec((N_HIDDEN, N_HIDDEN)),                   # W3^T
                weight_spec((1, N_HIDDEN)),                          # W4^T
            ],
            out_specs=pl.BlockSpec((1, 1, n_tile), lambda b, n: (b, 0, n)),
        ),
        # Every (b, n-tile) writes a disjoint output block and carries no
        # cross-step state, so both axes shard across TensorCores (v7x).
        compiler_params=pltpu.CompilerParams(
            dimension_semantics=("parallel", "parallel"),
            vmem_limit_bytes=48 * 1024 * 1024),
    )(cols, encT, rwf, w1T, w2T, w3T, w4T)

    # Softmax epilogue finished outside the kernel (tiny O(B*N) op): the 1/V
    # scale uses the GLOBAL N and padded tail queries are sliced off first.
    scores = scores[:, 0, :N]                                        # (B, N)
    scale = jnp.float32(N / (np.pi ** 2))
    return scale * jax.nn.softmax(scores, axis=1)


# ----------------------------------------------------------------------------
# ResNet-50 backbone (plain-JAX glue, NCHW, eval-mode BN, deterministic init)
# TODO(synk): the torchvision-pretrained CNN backbone is not a Pallas kernel;
# it runs as plain-JAX NCHW convs with deterministic synthetic weights.
# ----------------------------------------------------------------------------
def conv2d(x, w, stride, pad):
    return lax.conv_general_dilated(
        x, w, (stride, stride), [(pad, pad), (pad, pad)],
        dimension_numbers=("NCHW", "OIHW", "NCHW"))


def batchnorm(x, p, eps=1e-5):
    g = p["gamma"][None, :, None, None]
    b = p["beta"][None, :, None, None]
    m = p["mean"][None, :, None, None]
    v = p["var"][None, :, None, None]
    return (x - m) * g / jnp.sqrt(v + eps) + b


def maxpool3x3s2(x):
    return lax.reduce_window(
        x, -jnp.inf, lax.max, (1, 1, 3, 3), (1, 1, 2, 2),
        [(0, 0), (0, 0), (1, 1), (1, 1)])


def bottleneck(x, blk, stride):
    identity = x
    out = jax.nn.relu(batchnorm(conv2d(x, blk["w1"], 1, 0), blk["bn1"]))
    out = jax.nn.relu(batchnorm(conv2d(out, blk["w2"], stride, 1), blk["bn2"]))
    out = batchnorm(conv2d(out, blk["w3"], 1, 0), blk["bn3"])
    if "ds_w" in blk:
        identity = batchnorm(conv2d(x, blk["ds_w"], stride, 0), blk["ds_bn"])
    return jax.nn.relu(out + identity)


def resnet50_features(params, imgs):
    x = conv2d(imgs, params["conv1"], 2, 3)
    x = jax.nn.relu(batchnorm(x, params["bn1"]))
    x = maxpool3x3s2(x)
    strides = [1, 2, 2, 2]
    for layer, s0 in zip(params["layers"], strides):
        for bi, blk in enumerate(layer):
            x = bottleneck(x, blk, s0 if bi == 0 else 1)
    return jnp.mean(x, axis=(2, 3))          # adaptive avgpool (1,1) + flatten


def init_resnet50_params(key):
    keys = iter(jax.random.split(key, 64))

    def nk():
        return next(keys)

    def conv_w(out_c, in_c, kh, kw):
        fan_in = in_c * kh * kw
        return jax.random.normal(nk(), (out_c, in_c, kh, kw),
                                 jnp.float32) * np.sqrt(2.0 / fan_in)

    def bn_p(c):
        return {"gamma": jnp.ones((c,), jnp.float32),
                "beta": jnp.zeros((c,), jnp.float32),
                "mean": jnp.zeros((c,), jnp.float32),
                "var": jnp.ones((c,), jnp.float32)}

    params = {"conv1": conv_w(64, 3, 7, 7), "bn1": bn_p(64)}
    layer_cfg = [(64, 3), (128, 4), (256, 6), (512, 3)]
    strides = [1, 2, 2, 2]
    in_c = 64
    layers = []
    for (width, blocks), stride in zip(layer_cfg, strides):
        blocks_p = []
        for bi in range(blocks):
            s = stride if bi == 0 else 1
            blk = {"w1": conv_w(width, in_c, 1, 1), "bn1": bn_p(width),
                   "w2": conv_w(width, width, 3, 3), "bn2": bn_p(width),
                   "w3": conv_w(width * 4, width, 1, 1), "bn3": bn_p(width * 4)}
            if s != 1 or in_c != width * 4:
                blk["ds_w"] = conv_w(width * 4, in_c, 1, 1)
                blk["ds_bn"] = bn_p(width * 4)
            blocks_p.append(blk)
            in_c = width * 4
        layers.append(blocks_p)
    params["layers"] = layers
    return params


def init_head_params(key):
    ks = jax.random.split(key, 6)

    def lin(k, fan_in, fan_out):
        kw, kb = jax.random.split(k)
        lim = 1.0 / np.sqrt(fan_in)
        W = jax.random.uniform(kw, (fan_in, fan_out), jnp.float32, -lim, lim)
        b = jax.random.uniform(kb, (fan_out,), jnp.float32, -lim, lim)
        return W, b

    img_W, img_b = lin(ks[0], FEAT_DIM, N_HIDDEN)
    R_W, R_b = lin(ks[1], R_FEATS, N_HIDDEN)
    W1, b1 = lin(ks[2], N_HIDDEN, N_HIDDEN)
    W2, b2 = lin(ks[3], N_HIDDEN, N_HIDDEN)
    W3, b3 = lin(ks[4], N_HIDDEN, N_HIDDEN)
    W4, b4 = lin(ks[5], N_HIDDEN, 1)
    return dict(img_W=img_W, img_b=img_b, R_W=R_W, R_b=R_b,
                W1=W1, b1=b1, W2=W2, b2=b2, W3=W3, b3=b3, W4=W4, b4=b4)


# ----------------------------------------------------------------------------
# Pure-JAX reference for the head (numerical check of the Pallas kernel).
# Mirrors the kernel's numerics: Fourier branch and MLP with bf16
# weights/activations and f32 accumulation; img branch in f32.
# ----------------------------------------------------------------------------
def ipdf_head_ref(feat, Rs, hp):
    parts = []
    for l in range(L):
        parts.append(jnp.sin((2.0 ** l) * jnp.pi * Rs))
        parts.append(jnp.cos((2.0 ** l) * jnp.pi * Rs))
    enc = jnp.concatenate(parts, axis=-1)                       # (B, N, 54)
    img = jnp.dot(feat, hp["img_W"],
                  precision=lax.Precision.HIGHEST) + hp["img_b"]

    def mm(a, w):
        return jnp.matmul(a.astype(jnp.bfloat16), w.astype(jnp.bfloat16),
                          preferred_element_type=jnp.float32)

    x = img[:, None, :] + (mm(enc, hp["R_W"]) + hp["R_b"])      # (B, N, 256)
    h = jax.nn.relu(x)
    h = jax.nn.relu(mm(h, hp["W1"]) + hp["b1"])
    h = jax.nn.relu(mm(h, hp["W2"]) + hp["b2"])
    h = jax.nn.relu(mm(h, hp["W3"]) + hp["b3"])
    scores = (mm(h, hp["W4"]) + hp["b4"])[..., 0]               # (B, N)
    n = Rs.shape[1]
    V = np.pi ** 2 / n
    return (1.0 / V) * jax.nn.softmax(scores, axis=1)


def ipdf_forward(cnn_params, head_params, imgs, Rs):
    """Matches IPDF.forward: returns (B,) = (1/V) * softmax(scores, 1)[:, 0]."""
    feat = resnet50_features(cnn_params, imgs)
    probs_full = ipdf_head_pallas(feat, Rs, head_params)        # (B, N)
    return probs_full[:, 0], probs_full, feat


if __name__ == "__main__":
    key = jax.random.PRNGKey(0)
    k_img, k_rs, k_cnn, k_head = jax.random.split(key, 4)

    B, N = 2, 8
    imgs = jax.random.normal(k_img, (B, 3, 32, 32), jnp.float32)
    Rs = jax.random.uniform(k_rs, (B, N, 9), jnp.float32, -1.0, 1.0)

    cnn_params = init_resnet50_params(k_cnn)
    head_params = init_head_params(k_head)

    fwd = jax.jit(lambda im, rs: ipdf_forward(cnn_params, head_params, im, rs))
    probs, probs_full, feat = fwd(imgs, Rs)
    jax.block_until_ready(probs)

    # numerical check of the Pallas head against a pure-JAX reference
    ref_full = ipdf_head_ref(feat, Rs, head_params)
    assert probs.shape == (B,)
    assert bool(jnp.all(jnp.isfinite(probs_full)))
    assert bool(jnp.allclose(probs_full, ref_full, rtol=5e-2, atol=1e-3)), (
        "Pallas head does not match reference")

    print("KERNEL_OK")
</pallas_src>

<mosaic_0001>
module attributes {stable_mosaic.version = 11 : i64} {
  func.func @ipdf_head_kernel(%arg0: i32, %arg1: i32, %arg2: memref<1x256x8xf32, #tpu.memory_space<vmem>>, %arg3: memref<1x64x256xbf16, #tpu.memory_space<vmem>>, %arg4: memref<256x64xbf16, #tpu.memory_space<vmem>>, %arg5: memref<256x256xbf16, #tpu.memory_space<vmem>>, %arg6: memref<256x256xbf16, #tpu.memory_space<vmem>>, %arg7: memref<256x256xbf16, #tpu.memory_space<vmem>>, %arg8: memref<1x256xbf16, #tpu.memory_space<vmem>>, %arg9: memref<1x1x256xf32, #tpu.memory_space<vmem>>) attributes {dimension_semantics = [#tpu.dimension_semantics<parallel>, #tpu.dimension_semantics<parallel>], iteration_bounds = array<i64: 2, 1>, scalar_prefetch = 0 : i64, scratch_operands = 0 : i64, tpu.core_type = #tpu.core_type<tc>, window_params = [{transform_indices = @transform_0, window_bounds = array<i64: 1, 256, 8>}, {transform_indices = @transform_1, window_bounds = array<i64: 1, 64, 256>}, {pipeline_mode = #tpu.pipeline_mode<synchronous>, transform_indices = @transform_2, window_bounds = array<i64: 256, 64>}, {pipeline_mode = #tpu.pipeline_mode<synchronous>, transform_indices = @transform_3, window_bounds = array<i64: 256, 256>}, {pipeline_mode = #tpu.pipeline_mode<synchronous>, transform_indices = @transform_4, window_bounds = array<i64: 256, 256>}, {pipeline_mode = #tpu.pipeline_mode<synchronous>, transform_indices = @transform_5, window_bounds = array<i64: 256, 256>}, {pipeline_mode = #tpu.pipeline_mode<synchronous>, transform_indices = @transform_6, window_bounds = array<i64: 1, 256>}, {transform_indices = @transform_7, window_bounds = array<i64: 1, 1, 256>}]} {
    %c0 = arith.constant 0 : index
    %c0_0 = arith.constant 0 : index
    %c0_1 = arith.constant 0 : index
    %0 = vector.load %arg2[%c0, %c0_0, %c0_1] : memref<1x256x8xf32, #tpu.memory_space<vmem>>, vector<1x256x1xf32>
    %1 = vector.shape_cast %0 : vector<1x256x1xf32> to vector<256x1xf32>
    %c0_2 = arith.constant 0 : index
    %c0_3 = arith.constant 0 : index
    %c1 = arith.constant 1 : index
    %2 = vector.load %arg2[%c0_2, %c0_3, %c1] : memref<1x256x8xf32, #tpu.memory_space<vmem>>, vector<1x256x1xf32>
    %3 = vector.shape_cast %2 : vector<1x256x1xf32> to vector<256x1xf32>
    %c0_4 = arith.constant 0 : index
    %c0_5 = arith.constant 0 : index
    %c2 = arith.constant 2 : index
    %4 = vector.load %arg2[%c0_4, %c0_5, %c2] : memref<1x256x8xf32, #tpu.memory_space<vmem>>, vector<1x256x1xf32>
    %5 = vector.shape_cast %4 : vector<1x256x1xf32> to vector<256x1xf32>
    %c0_6 = arith.constant 0 : index
    %c0_7 = arith.constant 0 : index
    %c3 = arith.constant 3 : index
    %6 = vector.load %arg2[%c0_6, %c0_7, %c3] : memref<1x256x8xf32, #tpu.memory_space<vmem>>, vector<1x256x1xf32>
    %7 = vector.shape_cast %6 : vector<1x256x1xf32> to vector<256x1xf32>
    %c0_8 = arith.constant 0 : index
    %c0_9 = arith.constant 0 : index
    %c4 = arith.constant 4 : index
    %8 = vector.load %arg2[%c0_8, %c0_9, %c4] : memref<1x256x8xf32, #tpu.memory_space<vmem>>, vector<1x1x1xf32>
    %9 = vector.shape_cast %8 : vector<1x1x1xf32> to vector<1x1xf32>
    %c0_10 = arith.constant 0 : index
    %c0_11 = arith.constant 0 : index
    %10 = vector.load %arg4[%c0_10, %c0_11] : memref<256x64xbf16, #tpu.memory_space<vmem>>, vector<256x64xbf16>
    %c0_12 = arith.constant 0 : index
    %c0_13 = arith.constant 0 : index
    %c0_14 = arith.constant 0 : index
    %11 = vector.load %arg3[%c0_12, %c0_13, %c0_14] : memref<1x64x256xbf16, #tpu.memory_space<vmem>>, vector<1x64x256xbf16>
    %12 = vector.shape_cast %11 : vector<1x64x256xbf16> to vector<64x256xbf16>
    %cst = arith.constant dense<0.000000e+00> : vector<256x256xf32>
    %13 = tpu.matmul %10, %12, %cst {dimension_numbers = #tpu.dot_dimension_numbers<[1], [0], [0], [1], [0, 0, 1, 1], [], []>} : vector<256x64xbf16>, vector<64x256xbf16>, vector<256x256xf32> -> vector<256x256xf32>
    %14 = vector.broadcast %1 : vector<256x1xf32> to vector<256x256xf32>
    %15 = arith.addf %14, %13 : vector<256x256xf32>
    %16 = arith.truncf %15 : vector<256x256xf32> to vector<256x256xbf16>
    %cst_15 = arith.constant 0.000000e+00 : bf16
    %17 = vector.broadcast %cst_15 : bf16 to vector<256x256xbf16>
    %18 = arith.maximumf %16, %17 : vector<256x256xbf16>
    %c0_16 = arith.constant 0 : index
    %c0_17 = arith.constant 0 : index
    %19 = vector.load %arg5[%c0_16, %c0_17] : memref<256x256xbf16, #tpu.memory_space<vmem>>, vector<256x256xbf16>
    %cst_18 = arith.constant dense<0.000000e+00> : vector<256x256xf32>
    %20 = tpu.matmul %19, %18, %cst_18 {dimension_numbers = #tpu.dot_dimension_numbers<[1], [0], [0], [1], [0, 0, 1, 1], [], []>} : vector<256x256xbf16>, vector<256x256xbf16>, vector<256x256xf32> -> vector<256x256xf32>
    %21 = vector.broadcast %3 : vector<256x1xf32> to vector<256x256xf32>
    %22 = arith.addf %20, %21 : vector<256x256xf32>
    %23 = arith.truncf %22 : vector<256x256xf32> to vector<256x256xbf16>
    %cst_19 = arith.constant 0.000000e+00 : bf16
    %24 = vector.broadcast %cst_19 : bf16 to vector<256x256xbf16>
    %25 = arith.maximumf %23, %24 : vector<256x256xbf16>
    %c0_20 = arith.constant 0 : index
    %c0_21 = arith.constant 0 : index
    %26 = vector.load %arg6[%c0_20, %c0_21] : memref<256x256xbf16, #tpu.memory_space<vmem>>, vector<256x256xbf16>
    %cst_22 = arith.constant dense<0.000000e+00> : vector<256x256xf32>
    %27 = tpu.matmul %26, %25, %cst_22 {dimension_numbers = #tpu.dot_dimension_numbers<[1], [0], [0], [1], [0, 0, 1, 1], [], []>} : vector<256x256xbf16>, vector<256x256xbf16>, vector<256x256xf32> -> vector<256x256xf32>
    %28 = vector.broadcast %5 : vector<256x1xf32> to vector<256x256xf32>
    %29 = arith.addf %27, %28 : vector<256x256xf32>
    %30 = arith.truncf %29 : vector<256x256xf32> to vector<256x256xbf16>
    %cst_23 = arith.constant 0.000000e+00 : bf16
    %31 = vector.broadcast %cst_23 : bf16 to vector<256x256xbf16>
    %32 = arith.maximumf %30, %31 : vector<256x256xbf16>
    %c0_24 = arith.constant 0 : index
    %c0_25 = arith.constant 0 : index
    %33 = vector.load %arg7[%c0_24, %c0_25] : memref<256x256xbf16, #tpu.memory_space<vmem>>, vector<256x256xbf16>
    %cst_26 = arith.constant dense<0.000000e+00> : vector<256x256xf32>
    %34 = tpu.matmul %33, %32, %cst_26 {dimension_numbers = #tpu.dot_dimension_numbers<[1], [0], [0], [1], [0, 0, 1, 1], [], []>} : vector<256x256xbf16>, vector<256x256xbf16>, vector<256x256xf32> -> vector<256x256xf32>
    %35 = vector.broadcast %7 : vector<256x1xf32> to vector<256x256xf32>
    %36 = arith.addf %34, %35 : vector<256x256xf32>
    %37 = arith.truncf %36 : vector<256x256xf32> to vector<256x256xbf16>
    %cst_27 = arith.constant 0.000000e+00 : bf16
    %38 = vector.broadcast %cst_27 : bf16 to vector<256x256xbf16>
    %39 = arith.maximumf %37, %38 : vector<256x256xbf16>
    %c0_28 = arith.constant 0 : index
    %c0_29 = arith.constant 0 : index
    %40 = vector.load %arg8[%c0_28, %c0_29] : memref<1x256xbf16, #tpu.memory_space<vmem>>, vector<1x256xbf16>
    %cst_30 = arith.constant dense<0.000000e+00> : vector<1x256xf32>
    %41 = tpu.matmul %40, %39, %cst_30 {dimension_numbers = #tpu.dot_dimension_numbers<[1], [0], [0], [1], [0, 0, 1, 1], [], []>} : vector<1x256xbf16>, vector<256x256xbf16>, vector<1x256xf32> -> vector<1x256xf32>
    %42 = vector.broadcast %9 : vector<1x1xf32> to vector<1x256xf32>
    %43 = arith.addf %41, %42 : vector<1x256xf32>
    %c0_31 = arith.constant 0 : index
    %c0_32 = arith.constant 0 : index
    %c0_33 = arith.constant 0 : index
    %44 = vector.load %arg9[%c0_31, %c0_32, %c0_33] : memref<1x1x256xf32, #tpu.memory_space<vmem>>, vector<1x1x256xf32>
    %45 = vector.shape_cast %44 : vector<1x1x256xf32> to vector<1x256xf32>
    %46 = vector.shape_cast %43 : vector<1x256xf32> to vector<1x1x256xf32>
    tpu.vector_store %arg9[%c0_31, %c0_32, %c0_33], %46 {strides = array<i32>} : memref<1x1x256xf32, #tpu.memory_space<vmem>>, vector<1x1x256xf32>,
    return
  }
  func.func @transform_0(%arg0: i32, %arg1: i32) -> (i32, i32, i32) {
    %c0_i32 = arith.constant 0 : i32
    %c0_i32_0 = arith.constant 0 : i32
    %c0_i32_1 = arith.constant 0 : i32
    return %arg0, %c0_i32, %c0_i32_0 : i32, i32, i32
  }
  func.func @transform_1(%arg0: i32, %arg1: i32) -> (i32, i32, i32) {
    %c0_i32 = arith.constant 0 : i32
    %c0_i32_0 = arith.constant 0 : i32
    return %arg0, %c0_i32, %arg1 : i32, i32, i32
  }
  func.func @transform_2(%arg0: i32, %arg1: i32) -> (i32, i32) {
    %c0_i32 = arith.constant 0 : i32
    %c0_i32_0 = arith.constant 0 : i32
    %c0_i32_1 = arith.constant 0 : i32
    return %c0_i32, %c0_i32_0 : i32, i32
  }
  func.func @transform_3(%arg0: i32, %arg1: i32) -> (i32, i32) {
    %c0_i32 = arith.constant 0 : i32
    %c0_i32_0 = arith.constant 0 : i32
    %c0_i32_1 = arith.constant 0 : i32
    return %c0_i32, %c0_i32_0 : i32, i32
  }
  func.func @transform_4(%arg0: i32, %arg1: i32) -> (i32, i32) {
    %c0_i32 = arith.constant 0 : i32
    %c0_i32_0 = arith.constant 0 : i32
    %c0_i32_1 = arith.constant 0 : i32
    return %c0_i32, %c0_i32_0 : i32, i32
  }
  func.func @transform_5(%arg0: i32, %arg1: i32) -> (i32, i32) {
    %c0_i32 = arith.constant 0 : i32
    %c0_i32_0 = arith.constant 0 : i32
    %c0_i32_1 = arith.constant 0 : i32
    return %c0_i32, %c0_i32_0 : i32, i32
  }
  func.func @transform_6(%arg0: i32, %arg1: i32) -> (i32, i32) {
    %c0_i32 = arith.constant 0 : i32
    %c0_i32_0 = arith.constant 0 : i32
    %c0_i32_1 = arith.constant 0 : i32
    return %c0_i32, %c0_i32_0 : i32, i32
  }
  func.func @transform_7(%arg0: i32, %arg1: i32) -> (i32, i32, i32) {
    %c0_i32 = arith.constant 0 : i32
    %c0_i32_0 = arith.constant 0 : i32
    return %arg0, %c0_i32, %arg1 : i32, i32, i32
  }
}

</mosaic_0001>

<llo_original>
// kernel: _lambda_.1
$region0: #{_lambda_.1}
  #allocation0 [shape = 'u32[]', space=smem, size = 0x4, offset = 0x4, fixed_abs, tag = 'smem constant byte address 0x4 - core index']
  #allocation1 [shape = 'u32[144,128]{1,0:T(1,128)}', space=vmem, size = 0x12000, scoped, tag = 'internal scratch']
  %s0 = inlined_call_operand.vmem [shape: f32[2,256,8], index: 0, kind: input, shape index: {}]
  %s1 = inlined_call_operand.vmem [shape: bf16[2,64,256], index: 1, kind: input, shape index: {}]
  %s2 = inlined_call_operand.vmem [shape: bf16[256,64], index: 2, kind: input, shape index: {}]
  %s3 = inlined_call_operand.vmem [shape: bf16[256,256], index: 3, kind: input, shape index: {}]
  %s4 = inlined_call_operand.vmem [shape: bf16[256,256], index: 4, kind: input, shape index: {}]
  %s5 = inlined_call_operand.vmem [shape: bf16[256,256], index: 5, kind: input, shape index: {}]
  %s6 = inlined_call_operand.vmem [shape: bf16[1,256], index: 6, kind: input, shape index: {}]
  %s7 = inlined_call_operand.vmem [shape: f32[2,1,256], index: 7, kind: output, shape index: {}]
  %s8 = sld [smem:[#allocation0]]
  $region61: #{_lambda_.1} parent=0
    _
  %s10 = ssub.s32 1, %s8
  %s11 = scalar_select 0, %s10, %s8
  loop: start=0, step=1, limit=4
  $region2: #{_lambda_.1} parent=0 // loop_pre_header
    _
  $region3: #{_lambda_.1} parent=0 // loop_header
    %s13 = sphi 0, %s17
    %p14 = scmp.ge.s32.totalorder %s13, 4
    %s20 = sphi 0, %s32
    %s21 = sphi 0, %s28
    %s22 = sphi 0, %s20
    %s23 = sphi 0, %s21
    %s24 = sphi 0, %s22
    %s25 = sphi 0, %s23
    %s35 = sphi 0, %s37
    %s38 = sphi 0, %s35
    %s39 = sphi 0, %s38
    %s55 = sphi 0, %s39
    %s63 = sphi 0, %s65
    %s66 = sphi 0, %s63
    %s67 = sphi 0, %s66
    %s83 = sphi 0, %s67
    %s87 = sphi 0, %s87
    %s89 = sphi 0, %s87
    %s90 = sphi 0, %s89
    %s104 = sphi 0, %s90
    %s108 = sphi 0, %s108
    %s110 = sphi 0, %s108
    %s111 = sphi 0, %s110
    %s125 = sphi 0, %s111
    %s129 = sphi 0, %s129
    %s131 = sphi 0, %s129
    %s132 = sphi 0, %s131
    %s146 = sphi 0, %s132
    %s150 = sphi 0, %s150
    %s152 = sphi 0, %s150
    %s153 = sphi 0, %s152
    %s167 = sphi 0, %s153
    %s171 = sphi 0, %s171
    %s173 = sphi 0, %s171
    %s174 = sphi 0, %s173
    %s188 = sphi 0, %s174
    %s196 = sphi 0, %s198
    %s199 = sphi 0, %s196
    %s200 = sphi 0, %s199
    %s216 = sphi 0, %s200
  $region4: #{_lambda_.1} parent=0 // loop_header_branch
    %16 = sbr.rel (%p14) target = $region8
  $region5: #{_lambda_.1} parent=0 // loop_body
    %s18 = ssub.s32 %s13, 1
    %s19 = ssub.s32 %s13, 2
    %s26 = sadd.s32 1, %s21
    %p27 = scmp.ge.s32.totalorder %s26, 1
    %s28 = scalar_select %p27, 0, %s26
    %s29 = sadd.s32 1, %s20
    %s30 = scalar_select %p27, %s29, %s20
    %p31 = scmp.ge.s32.totalorder %s30, 2
    %s32 = scalar_select %p31, 0, %s30
    %s33 = ssub.s32 %s20, %s32
    %p34 = scmp.eq.s32.totalorder %s33, 0
    %s36 = sadd.s32 %s35, 1
    %s37 = scalar_select %p34, %s35, %s36
    %p40 = pneg %p34
    %p41 = scmp.eq.s32.totalorder %s13, 1
    %p42 = por %p40, %p41
    %p43 = scmp.ne.s32.totalorder %s35, %s38
    %p44 = scmp.eq.s32.totalorder %s13, 0
    %p45 = por %p43, %p44
    %p46 = scmp.ne.s32.totalorder %s35, %s38
    %p47 = scmp.eq.s32.totalorder %s18, 1
    %p48 = por %p46, %p47
    %p49 = scmp.ne.s32.totalorder %s38, %s39
    %p50 = scmp.eq.s32.totalorder %s18, 0
    %p51 = por %p49, %p50
    %p52 = scmp.ne.s32.totalorder %s38, %s39
    %p53 = scmp.eq.s32.totalorder %s19, 1
    %p54 = por %p52, %p53
    %p56 = scmp.ne.s32.totalorder %s39, %s55
    %p57 = scmp.eq.s32.totalorder %s19, 0
    %p58 = por %p56, %p57
    %s59 = ssub.s32 %s20, %s32
    %s60 = ssub.s32 %s21, %s28
    %s61 = sor.u32 %s59, %s60
    %p62 = scmp.eq.s32.totalorder %s61, 0
    %s64 = sadd.s32 %s63, 1
    %s65 = scalar_select %p62, %s63, %s64
    %p68 = pneg %p62
    %p69 = scmp.eq.s32.totalorder %s13, 1
    %p70 = por %p68, %p69
    %p71 = scmp.ne.s32.totalorder %s63, %s66
    %p72 = scmp.eq.s32.totalorder %s13, 0
    %p73 = por %p71, %p72
    %p74 = scmp.ne.s32.totalorder %s63, %s66
    %p75 = scmp.eq.s32.totalorder %s18, 1
    %p76 = por %p74, %p75
    %p77 = scmp.ne.s32.totalorder %s66, %s67
    %p78 = scmp.eq.s32.totalorder %s18, 0
    %p79 = por %p77, %p78
    %p80 = scmp.ne.s32.totalorder %s66, %s67
    %p81 = scmp.eq.s32.totalorder %s19, 1
    %p82 = por %p80, %p81
    %p84 = scmp.ne.s32.totalorder %s67, %s83
    %p85 = scmp.eq.s32.totalorder %s19, 0
    %p86 = por %p84, %p85
    %s88 = sadd.s32 %s87, 1
    %p91 = scmp.eq.s32.totalorder %s13, 1
    %p92 = scmp.ne.s32.totalorder %s87, %s89
    %p93 = scmp.eq.s32.totalorder %s13, 0
    %p94 = por %p92, %p93
    %p95 = scmp.ne.s32.totalorder %s87, %s89
    %p96 = scmp.eq.s32.totalorder %s18, 1
    %p97 = por %p95, %p96
    %p98 = scmp.ne.s32.totalorder %s89, %s90
    %p99 = scmp.eq.s32.totalorder %s18, 0
    %p100 = por %p98, %p99
    %p101 = scmp.ne.s32.totalorder %s89, %s90
    %p102 = scmp.eq.s32.totalorder %s19, 1
    %p103 = por %p101, %p102
    %p105 = scmp.ne.s32.totalorder %s90, %s104
    %p106 = scmp.eq.s32.totalorder %s19, 0
    %p107 = por %p105, %p106
    %s109 = sadd.s32 %s108, 1
    %p112 = scmp.eq.s32.totalorder %s13, 1
    %p113 = scmp.ne.s32.totalorder %s108, %s110
    %p114 = scmp.eq.s32.totalorder %s13, 0
    %p115 = por %p113, %p114
    %p116 = scmp.ne.s32.totalorder %s108, %s110
    %p117 = scmp.eq.s32.totalorder %s18, 1
    %p118 = por %p116, %p117
    %p119 = scmp.ne.s32.totalorder %s110, %s111
    %p120 = scmp.eq.s32.totalorder %s18, 0
    %p121 = por %p119, %p120
    %p122 = scmp.ne.s32.totalorder %s110, %s111
    %p123 = scmp.eq.s32.totalorder %s19, 1
    %p124 = por %p122, %p123
    %p126 = scmp.ne.s32.totalorder %s111, %s125
    %p127 = scmp.eq.s32.totalorder %s19, 0
    %p128 = por %p126, %p127
    %s130 = sadd.s32 %s129, 1
    %p133 = scmp.eq.s32.totalorder %s13, 1
    %p134 = scmp.ne.s32.totalorder %s129, %s131
    %p135 = scmp.eq.s32.totalorder %s13, 0
    %p136 = por %p134, %p135
    %p137 = scmp.ne.s32.totalorder %s129, %s131
    %p138 = scmp.eq.s32.totalorder %s18, 1
    %p139 = por %p137, %p138
    %p140 = scmp.ne.s32.totalorder %s131, %s132
    %p141 = scmp.eq.s32.totalorder %s18, 0
    %p142 = por %p140, %p141
    %p143 = scmp.ne.s32.totalorder %s131, %s132
    %p144 = scmp.eq.s32.totalorder %s19, 1
    %p145 = por %p143, %p144
    %p147 = scmp.ne.s32.totalorder %s132, %s146
    %p148 = scmp.eq.s32.totalorder %s19, 0
    %p149 = por %p147, %p148
    %s151 = sadd.s32 %s150, 1
    %p154 = scmp.eq.s32.totalorder %s13, 1
    %p155 = scmp.ne.s32.totalorder %s150, %s152
    %p156 = scmp.eq.s32.totalorder %s13, 0
    %p157 = por %p155, %p156
    %p158 = scmp.ne.s32.totalorder %s150, %s152
    %p159 = scmp.eq.s32.totalorder %s18, 1
    %p160 = por %p158, %p159
    %p161 = scmp.ne.s32.totalorder %s152, %s153
    %p162 = scmp.eq.s32.totalorder %s18, 0
    %p163 = por %p161, %p162
    %p164 = scmp.ne.s32.totalorder %s152, %s153
    %p165 = scmp.eq.s32.totalorder %s19, 1
    %p166 = por %p164, %p165
    %p168 = scmp.ne.s32.totalorder %s153, %s167
    %p169 = scmp.eq.s32.totalorder %s19, 0
    %p170 = por %p168, %p169
    %s172 = sadd.s32 %s171, 1
    %p175 = scmp.eq.s32.totalorder %s13, 1
    %p176 = scmp.ne.s32.totalorder %s171, %s173
    %p177 = scmp.eq.s32.totalorder %s13, 0
    %p178 = por %p176, %p177
    %p179 = scmp.ne.s32.totalorder %s171, %s173
    %p180 = scmp.eq.s32.totalorder %s18, 1
    %p181 = por %p179, %p180
    %p182 = scmp.ne.s32.totalorder %s173, %s174
    %p183 = scmp.eq.s32.totalorder %s18, 0
    %p184 = por %p182, %p183
    %p185 = scmp.ne.s32.totalorder %s173, %s174
    %p186 = scmp.eq.s32.totalorder %s19, 1
    %p187 = por %p185, %p186
    %p189 = scmp.ne.s32.totalorder %s174, %s188
    %p190 = scmp.eq.s32.totalorder %s19, 0
    %p191 = por %p189, %p190
    %s192 = ssub.s32 %s20, %s32
    %s193 = ssub.s32 %s21, %s28
    %s194 = sor.u32 %s192, %s193
    %p195 = scmp.eq.s32.totalorder %s194, 0
    %s197 = sadd.s32 %s196, 1
    %s198 = scalar_select %p195, %s196, %s197
    %p201 = pneg %p195
    %p202 = scmp.eq.s32.totalorder %s13, 1
    %p203 = por %p201, %p202
    %p204 = scmp.ne.s32.totalorder %s196, %s199
    %p205 = scmp.eq.s32.totalorder %s13, 0
    %p206 = por %p204, %p205
    %p207 = scmp.ne.s32.totalorder %s196, %s199
    %p208 = scmp.eq.s32.totalorder %s18, 1
    %p209 = por %p207, %p208
    %p210 = scmp.ne.s32.totalorder %s199, %s200
    %p211 = scmp.eq.s32.totalorder %s18, 0
    %p212 = por %p210, %p211
    %p213 = scmp.ne.s32.totalorder %s199, %s200
    %p214 = scmp.eq.s32.totalorder %s19, 1
    %p215 = por %p213, %p214
    %p217 = scmp.ne.s32.totalorder %s200, %s216
    %p218 = scmp.eq.s32.totalorder %s19, 0
    %p219 = por %p217, %p218
    %p220 = scmp.le.s32.totalorder 1, %s13
    %p221 = scmp.lt.s32.totalorder %s13, 3
    %p222 = pnand %p220, %p221
    %p223 = pneg %p222
    // Predicated region
    $region9: #{_lambda_.1} parent=5 // pred_check
      _
    $region10: #{_lambda_.1} parent=5 // pred_check_branch
      %225 = sbr.rel (%p222) target = $region12
    $region11: #{_lambda_.1} parent=5 // pred_region
      %s226 = ssub.s32 %s13, 1
      // Predicated region
      $region13: #{_lambda_.1} parent=11 // pred_check
        %p227 = pneg %p100
      $region14: #{_lambda_.1} parent=11 // pred_check_branch
        %229 = sbr.rel (%p227) target = $region16
      $region15: #{_lambda_.1} parent=11 // pred_region
        _
      $region16: #{_lambda_.1} parent=11 // pred_fallthru
        _
      // Predicated region
      $region17: #{_lambda_.1} parent=11 // pred_check
        %p230 = pneg %p121
      $region18: #{_lambda_.1} parent=11 // pred_check_branch
        %232 = sbr.rel (%p230) target = $region20
      $region19: #{_lambda_.1} parent=11 // pred_region
        _
      $region20: #{_lambda_.1} parent=11 // pred_fallthru
        _
      // Predicated region
      $region21: #{_lambda_.1} parent=11 // pred_check
        %p233 = pneg %p142
      $region22: #{_lambda_.1} parent=11 // pred_check_branch
        %235 = sbr.rel (%p233) target = $region24
      $region23: #{_lambda_.1} parent=11 // pred_region
        _
      $region24: #{_lambda_.1} parent=11 // pred_fallthru
        _
      // Predicated region
      $region25: #{_lambda_.1} parent=11 // pred_check
        %p236 = pneg %p163
      $region26: #{_lambda_.1} parent=11 // pred_check_branch
        %238 = sbr.rel (%p236) target = $region28
      $region27: #{_lambda_.1} parent=11 // pred_region
        _
      $region28: #{_lambda_.1} parent=11 // pred_fallthru
        _
      // Predicated region
      $region29: #{_lambda_.1} parent=11 // pred_check
        %p239 = pneg %p184
      $region30: #{_lambda_.1} parent=11 // pred_check_branch
        %241 = sbr.rel (%p239) target = $region32
      $region31: #{_lambda_.1} parent=11 // pred_region
        _
      $region32: #{_lambda_.1} parent=11 // pred_fallthru
        _
    $region12: #{_lambda_.1} parent=5 // pred_fallthru
      _
    %p242 = scmp.lt.s32.totalorder %s13, 2
    // Predicated region
    $region33: #{_lambda_.1} parent=5 // pred_check
      %p243 = pneg %p242
    $region34: #{_lambda_.1} parent=5 // pred_check_branch
      %245 = sbr.rel (%p243) target = $region36
    $region35: #{_lambda_.1} parent=5 // pred_region
      // Predicated region
      $region37: #{_lambda_.1} parent=35 // pred_check
        %p246 = pneg %p45
      $region38: #{_lambda_.1} parent=35 // pred_check_branch
        %248 = sbr.rel (%p246) target = $region40
      $region39: #{_lambda_.1} parent=35 // pred_region
        %p249 = scmp.lt.s32.totalorder %s20, 1
        %s250 = scalar_select %p249, %s20, 1
        %s251 = smul.addr %s250, 32
        %s252 = smul.addr %s251, 8
        %s253 = scalar_lea.vmem %s0, %s252
      $region40: #{_lambda_.1} parent=35 // pred_fallthru
        _
      // Predicated region
      $region41: #{_lambda_.1} parent=35 // pred_check
        %p254 = pneg %p73
      $region42: #{_lambda_.1} parent=35 // pred_check_branch
        %256 = sbr.rel (%p254) target = $region44
      $region43: #{_lambda_.1} parent=35 // pred_region
        %s257 = smul.u32 2, %s21
        %p258 = scmp.lt.s32.totalorder %s20, 1
        %s259 = scalar_select %p258, %s20, 1
        %p260 = scmp.lt.s32.totalorder %s257, 1
        %s261 = scalar_select %p260, %s257, 1
        %s262 = smul.addr %s259, 16
        %s263 = sadd.s32 %s261, %s262
        %s264 = smul.addr %s263, 4
        %s265 = scalar_lea.vmem %s1, %s264
        %s266 = smul.u32 2, %s21
      $region44: #{_lambda_.1} parent=35 // pred_fallthru
        _
    $region36: #{_lambda_.1} parent=5 // pred_fallthru
      _
    %p267 = scmp.le.s32.totalorder 1, %s13
    %p268 = scmp.lt.s32.totalorder %s13, 3
    %p269 = pnand %p267, %p268
    %p270 = pneg %p269
    // Predicated region
    $region45: #{_lambda_.1} parent=5 // pred_check
      _
    $region46: #{_lambda_.1} parent=5 // pred_check_branch
      %272 = sbr.rel (%p269) target = $region48
    $region47: #{_lambda_.1} parent=5 // pred_region
      %s273 = ssub.s32 %s13, 1
      %p274 = scmp.lt.s32.totalorder %s22, 1
      %s275 = scalar_select %p274, %s22, 1
      %s276 = smul.addr %s275, 32
      %s277 = smul.addr %s276, 8
      %s278 = scalar_lea.vmem %s0, %s277
      %p279 = pneg %p51
      %p280 = pneg %p48
      %s281 = smul.u32 2, %s23
      %p282 = scmp.lt.s32.totalorder %s22, 1
      %s283 = scalar_select %p282, %s22, 1
      %p284 = scmp.lt.s32.totalorder %s281, 1
      %s285 = scalar_select %p284, %s281, 1
      %s286 = smul.addr %s283, 16
      %s287 = sadd.s32 %s285, %s286
      %s288 = smul.addr %s287, 4
      %s289 = scalar_lea.vmem %s1, %s288
      %p290 = pneg %p79
      %p291 = pneg %p76
      %p292 = pneg %p100
      %p293 = pneg %p97
      %p294 = pneg %p121
      %p295 = pneg %p118
      %p296 = pneg %p142
      %p297 = pneg %p139
      %p298 = pneg %p163
      %p299 = pneg %p160
      %p300 = pneg %p184
      %p301 = pneg %p181
      %p302 = pneg %p212
      %p303 = pneg %p209
      %s304 = smul.u32 2, %s23
      %p305 = scmp.lt.s32.totalorder %s22, 1
      %s306 = scalar_select %p305, %s22, 1
      %p307 = scmp.lt.s32.totalorder %s304, 1
      %s308 = scalar_select %p307, %s304, 1
      %s309 = smul.addr %s306, 2
      %s310 = sadd.s32 %s308, %s309
      %s311 = scalar_lea.vmem %s7, %s310
      %p312 = scmp.lt.s32.totalorder %s22, 1
      %s313 = scalar_select %p312, %s22, 1
      %s314 = smul.addr %s313, 32
      %s315 = smul.addr %s314, 8
      %s316 = scalar_lea.vmem %s0, %s315
      %s317 = smul.u32 2, %s23
      %p318 = scmp.lt.s32.totalorder %s22, 1
      %s319 = scalar_select %p318, %s22, 1
      %p320 = scmp.lt.s32.totalorder %s317, 1
      %s321 = scalar_select %p320, %s317, 1
      %s322 = smul.addr %s319, 16
      %s323 = sadd.s32 %s321, %s322
      %s324 = smul.addr %s323, 4
      %s325 = scalar_lea.vmem %s1, %s324
      %s326 = smul.u32 2, %s23
      %s327 = smul.u32 2, %s23
      %p328 = scmp.lt.s32.totalorder %s22, 1
      %s329 = scalar_select %p328, %s22, 1
      %p330 = scmp.lt.s32.totalorder %s327, 1
      %s331 = scalar_select %p330, %s327, 1
      %s332 = smul.addr %s329, 2
      %s333 = sadd.s32 %s331, %s332
      %s334 = scalar_lea.vmem %s7, %s333
      %s335 = smul.u32 2, %s23
      %v337 = vld [vmem:[%s316] sm:$0xff]
      %v338 = vld [vmem:[%s316 + $0x8] sm:$0xff]
      %v339 = vld [vmem:[%s316 + $0x10] sm:$0xff]
      %v340 = vld [vmem:[%s316 + $0x18] sm:$0xff]
      %v341 = vld [vmem:[%s316 + $0x20] sm:$0xff]
      %v342 = vld [vmem:[%s316 + $0x28] sm:$0xff]
      %v343 = vld [vmem:[%s316 + $0x30] sm:$0xff]
      %v344 = vld [vmem:[%s316 + $0x38] sm:$0xff]
      %v345 = vld [vmem:[%s316 + $0x40] sm:$0xff]
      %v346 = vld [vmem:[%s316 + $0x48] sm:$0xff]
      %v347 = vld [vmem:[%s316 + $0x50] sm:$0xff]
      %v348 = vld [vmem:[%s316 + $0x58] sm:$0xff]
      %v349 = vld [vmem:[%s316 + $0x60] sm:$0xff]
      %v350 = vld [vmem:[%s316 + $0x68] sm:$0xff]
      %v351 = vld [vmem:[%s316 + $0x70] sm:$0xff]
      %v352 = vld [vmem:[%s316 + $0x78] sm:$0xff]
      %v353 = vld [vmem:[%s316 + $0x80] sm:$0xff]
      %v354 = vld [vmem:[%s316 + $0x88] sm:$0xff]
      %v355 = vld [vmem:[%s316 + $0x90] sm:$0xff]
      %v356 = vld [vmem:[%s316 + $0x98] sm:$0xff]
      %v357 = vld [vmem:[%s316 + $0xa0] sm:$0xff]
      %v358 = vld [vmem:[%s316 + $0xa8] sm:$0xff]
      %v359 = vld [vmem:[%s316 + $0xb0] sm:$0xff]
      %v360 = vld [vmem:[%s316 + $0xb8] sm:$0xff]
      %v361 = vld [vmem:[%s316 + $0xc0] sm:$0xff]
      %v362 = vld [vmem:[%s316 + $0xc8] sm:$0xff]
      %v363 = vld [vmem:[%s316 + $0xd0] sm:$0xff]
      %v364 = vld [vmem:[%s316 + $0xd8] sm:$0xff]
      %v365 = vld [vmem:[%s316 + $0xe0] sm:$0xff]
      %v366 = vld [vmem:[%s316 + $0xe8] sm:$0xff]
      %v367 = vld [vmem:[%s316 + $0xf0] sm:$0xff]
      %v368 = vld [vmem:[%s316 + $0xf8] sm:$0xff]
      %v369 = vld [vmem:[%s316] sm:$0x1]
      %v370 = vld [vmem:[%s2] sm:$0xf]
      %v371 = vld [vmem:[%s2 + $0x4] sm:$0xf]
      %v372 = vld [vmem:[%s2 + $0x8] sm:$0xf]
      %v373 = vld [vmem:[%s2 + $0xc] sm:$0xf]
      %v374 = vld [vmem:[%s2 + $0x10] sm:$0xf]
      %v375 = vld [vmem:[%s2 + $0x14] sm:$0xf]
      %v376 = vld [vmem:[%s2 + $0x18] sm:$0xf]
      %v377 = vld [vmem:[%s2 + $0x1c] sm:$0xf]
      %v378 = vld [vmem:[%s2 + $0x20] sm:$0xf]
      %v379 = vld [vmem:[%s2 + $0x24] sm:$0xf]
      %v380 = vld [vmem:[%s2 + $0x28] sm:$0xf]
      %v381 = vld [vmem:[%s2 + $0x2c] sm:$0xf]
      %v382 = vld [vmem:[%s2 + $0x30] sm:$0xf]
      %v383 = vld [vmem:[%s2 + $0x34] sm:$0xf]
      %v384 = vld [vmem:[%s2 + $0x38] sm:$0xf]
      %v385 = vld [vmem:[%s2 + $0x3c] sm:$0xf]
      %v386 = vld [vmem:[%s2 + $0x40] sm:$0xf]
      %v387 = vld [vmem:[%s2 + $0x44] sm:$0xf]
      %v388 = vld [vmem:[%s2 + $0x48] sm:$0xf]
      %v389 = vld [vmem:[%s2 + $0x4c] sm:$0xf]
      %v390 = vld [vmem:[%s2 + $0x50] sm:$0xf]
      %v391 = vld [vmem:[%s2 + $0x54] sm:$0xf]
      %v392 = vld [vmem:[%s2 + $0x58] sm:$0xf]
      %v393 = vld [vmem:[%s2 + $0x5c] sm:$0xf]
      %v394 = vld [vmem:[%s2 + $0x60] sm:$0xf]
      %v395 = vld [vmem:[%s2 + $0x64] sm:$0xf]
      %v396 = vld [vmem:[%s2 + $0x68] sm:$0xf]
      %v397 = vld [vmem:[%s2 + $0x6c] sm:$0xf]
      %v398 = vld [vmem:[%s2 + $0x70] sm:$0xf]
      %v399 = vld [vmem:[%s2 + $0x74] sm:$0xf]
      %v400 = vld [vmem:[%s2 + $0x78] sm:$0xf]
      %v401 = vld [vmem:[%s2 + $0x7c] sm:$0xf]
      %v402 = vld [vmem:[%s325] sm:$0xff]
      %v403 = vld [vmem:[%s325 + $0x8] sm:$0xff]
      %v404 = vld [vmem:[%s325 + $0x10] sm:$0xff]
      %v405 = vld [vmem:[%s325 + $0x18] sm:$0xff]
      %v406 = vld [vmem:[%s325 + $0x20] sm:$0xff]
      %v407 = vld [vmem:[%s325 + $0x28] sm:$0xff]
      %v408 = vld [vmem:[%s325 + $0x30] sm:$0xff]
      %v409 = vld [vmem:[%s325 + $0x38] sm:$0xff]
      %v442 = vunpack.c.l.b16 %v370
      %v443 = vunpack.c.l.b16 %v371
      %v444 = vunpack.c.l.b16 %v372
      %v445 = vunpack.c.l.b16 %v373
      %v446 = vunpack.c.l.b16 %v374
      %v447 = vunpack.c.l.b16 %v375
      %v448 = vunpack.c.l.b16 %v376
      %v449 = vunpack.c.l.b16 %v377
      %v450 = vunpack.c.l.b16 %v378
      %v451 = vunpack.c.l.b16 %v379
      %v452 = vunpack.c.l.b16 %v380
      %v453 = vunpack.c.l.b16 %v381
      %v454 = vunpack.c.l.b16 %v382
      %v455 = vunpack.c.l.b16 %v383
      %v456 = vunpack.c.l.b16 %v384
      %v457 = vunpack.c.l.b16 %v385
      %v458 = vunpack.c.l.b16 %v386
      %v459 = vunpack.c.l.b16 %v387
      %v460 = vunpack.c.l.b16 %v388
      %v461 = vunpack.c.l.b16 %v389
      %v462 = vunpack.c.l.b16 %v390
      %v463 = vunpack.c.l.b16 %v391
      %v464 = vunpack.c.l.b16 %v392
      %v465 = vunpack.c.l.b16 %v393
      %v466 = vunpack.c.l.b16 %v394
      %v467 = vunpack.c.l.b16 %v395
      %v468 = vunpack.c.l.b16 %v396
      %v469 = vunpack.c.l.b16 %v397
      %v470 = vunpack.c.l.b16 %v398
      %v471 = vunpack.c.l.b16 %v399
      %v472 = vunpack.c.l.b16 %v400
      %v473 = vunpack.c.l.b16 %v401
      %v474 = vpack.c.b16 %v443, %v442
      %v475 = vpack.c.b16 %v445, %v444
      %v476 = vpack.c.b16 %v447, %v446
      %v477 = vpack.c.b16 %v449, %v448
      %v478 = vpack.c.b16 %v451, %v450
      %v479 = vpack.c.b16 %v453, %v452
      %v480 = vpack.c.b16 %v455, %v454
      %v481 = vpack.c.b16 %v457, %v456
      %v482 = vpack.c.b16 %v459, %v458
      %v483 = vpack.c.b16 %v461, %v460
      %v484 = vpack.c.b16 %v463, %v462
      %v485 = vpack.c.b16 %v465, %v464
      %v486 = vpack.c.b16 %v467, %v466
      %v487 = vpack.c.b16 %v469, %v468
      %v488 = vpack.c.b16 %v471, %v470
      %v489 = vpack.c.b16 %v473, %v472
      %v498 = vunpack.c.l.b16 %v402
      %v499 = vunpack.c.h.b16 %v402
      %v500 = vunpack.c.l.b16 %v403
      %v501 = vunpack.c.h.b16 %v403
      %v502 = vunpack.c.l.b16 %v404
      %v503 = vunpack.c.h.b16 %v404
      %v504 = vunpack.c.l.b16 %v405
      %v505 = vunpack.c.h.b16 %v405
      %v506 = vunpack.c.l.b16 %v406
      %v507 = vunpack.c.h.b16 %v406
      %v508 = vunpack.c.l.b16 %v407
      %v509 = vunpack.c.h.b16 %v407
      %v510 = vunpack.c.l.b16 %v408
      %v511 = vunpack.c.h.b16 %v408
      %v512 = vunpack.c.l.b16 %v409
      %v513 = vunpack.c.h.b16 %v409
      %v514 = vpack.c.b16 %v500, %v498
      %v515 = vpack.c.b16 %v501, %v499
      %v516 = vpack.c.b16 %v504, %v502
      %v517 = vpack.c.b16 %v505, %v503
      %v518 = vpack.c.b16 %v508, %v506
      %v519 = vpack.c.b16 %v509, %v507
      %v520 = vpack.c.b16 %v512, %v510
      %v521 = vpack.c.b16 %v513, %v511
      %vm530 = vcmask 523264
      %v532 = vsel %vm530, %v474, 0
      %v535 = vsel %vm530, %v475, 0
      %v538 = vsel %vm530, %v476, 0
      %v541 = vsel %vm530, %v477, 0
      %v544 = vsel %vm530, %v478, 0
      %v547 = vsel %vm530, %v479, 0
      %v550 = vsel %vm530, %v480, 0
      %v553 = vsel %vm530, %v481, 0
      %v556 = vsel %vm530, %v482, 0
      %v559 = vsel %vm530, %v483, 0
      %v562 = vsel %vm530, %v484, 0
      %v565 = vsel %vm530, %v485, 0
      %v568 = vsel %vm530, %v486, 0
      %v571 = vsel %vm530, %v487, 0
      %v574 = vsel %vm530, %v488, 0
      %v577 = vsel %vm530, %v489, 0
      %579 = vmatprep.subr.bf16.mxu0 %v515
      %580 = vmatpush1.bf16.msra.mxu0 %v514
      %581 = vmatprep.subr.bf16.mxu0 %v517
      %582 = vmatpush1.bf16.msra.mxu0 %v516
      %583 = vmatprep.subr.bf16.mxu0 %v519
      %584 = vmatpush1.bf16.msra.mxu0 %v518
      %585 = vmatprep.subr.bf16.mxu0 %v521
      %586 = vmatpush1.bf16.msra.mxu0 %v520
      %587 = vmatprep.subr.bf16.mxu0 0
      %588 = vmatpush1.bf16.msra.mxu0 0
      %589 = vmatprep.subr.bf16.mxu0 0
      %590 = vmatpush1.bf16.msra.mxu0 0
      %591 = vmatprep.subr.bf16.mxu0 0
      %592 = vmatpush1.bf16.msra.mxu0 0
      %593 = vmatprep.subr.bf16.mxu0 0
      %594 = vmatpush1.bf16.msra.mxu0 0
      %595 = vmatprep.subr.bf16.mxu0 0
      %596 = vmatpush1.bf16.msra.mxu0 0
      %597 = vmatprep.subr.bf16.mxu0 0
      %598 = vmatpush1.bf16.msra.mxu0 0
      %599 = vmatprep.subr.bf16.mxu0 0
      %600 = vmatpush1.bf16.msra.mxu0 0
      %601 = vmatprep.subr.bf16.mxu0 0
      %602 = vmatpush1.bf16.msra.mxu0 0
      %603 = vmatprep.subr.bf16.mxu0 0
      %604 = vmatpush1.bf16.msra.mxu0 0
      %605 = vmatprep.subr.bf16.mxu0 0
      %606 = vmatpush1.bf16.msra.mxu0 0
      %607 = vmatprep.subr.bf16.mxu0 0
      %608 = vmatpush1.bf16.msra.mxu0 0
      %609 = vmatprep.subr.bf16.mxu0 0
      %610 = vmatpush1.bf16.msra.mxu0 0
      %611 = vmatprep.mubr.bf16.mxu0 0
      %612 = vmatmul.mubr.bf16.gmra.mrb[0].mxu0 %v532
      %v613 = vpop.f32.mrb[0].mxu0
      %v614 = vadd.f32 0.0, %v613
      %v615 = vpop.f32.mrb[0].mxu0
      %v616 = vadd.f32 0.0, %v615
      %v617 = vpop.f32.mrb[0].mxu0
      %v618 = vadd.f32 0.0, %v617
      %v619 = vpop.f32.mrb[0].mxu0
      %v620 = vadd.f32 0.0, %v619
      %621 = vmatprep.mubr.bf16.mxu0 0
      %622 = vmatmul.mubr.bf16.gmra.mrb[0].mxu0 %v535
      %v623 = vpop.f32.mrb[0].mxu0
      %v624 = vadd.f32 0.0, %v623
      %v625 = vpop.f32.mrb[0].mxu0
      %v626 = vadd.f32 0.0, %v625
      %v627 = vpop.f32.mrb[0].mxu0
      %v628 = vadd.f32 0.0, %v627
      %v629 = vpop.f32.mrb[0].mxu0
      %v630 = vadd.f32 0.0, %v629
      %631 = vmatprep.mubr.bf16.mxu0 0
      %632 = vmatmul.mubr.bf16.gmra.mrb[0].mxu0 %v538
      %v633 = vpop.f32.mrb[0].mxu0
      %v634 = vadd.f32 0.0, %v633
      %v635 = vpop.f32.mrb[0].mxu0
      %v636 = vadd.f32 0.0, %v635
      %v637 = vpop.f32.mrb[0].mxu0
      %v638 = vadd.f32 0.0, %v637
      %v639 = vpop.f32.mrb[0].mxu0
      %v640 = vadd.f32 0.0, %v639
      %641 = vmatprep.mubr.bf16.mxu0 0
      %642 = vmatmul.mubr.bf16.gmra.mrb[0].mxu0 %v541
      %v643 = vpop.f32.mrb[0].mxu0
      %v644 = vadd.f32 0.0, %v643
      %v645 = vpop.f32.mrb[0].mxu0
      %v646 = vadd.f32 0.0, %v645
      %v647 = vpop.f32.mrb[0].mxu0
      %v648 = vadd.f32 0.0, %v647
      %v649 = vpop.f32.mrb[0].mxu0
      %v650 = vadd.f32 0.0, %v649
      %651 = vmatprep.mubr.bf16.mxu0 0
      %652 = vmatmul.mubr.bf16.gmra.mrb[0].mxu0 %v544
      %v653 = vpop.f32.mrb[0].mxu0
      %v654 = vadd.f32 0.0, %v653
      %v655 = vpop.f32.mrb[0].mxu0
      %v656 = vadd.f32 0.0, %v655
      %v657 = vpop.f32.mrb[0].mxu0
      %v658 = vadd.f32 0.0, %v657
      %v659 = vpop.f32.mrb[0].mxu0
      %v660 = vadd.f32 0.0, %v659
      %661 = vmatprep.mubr.bf16.mxu0 0
      %662 = vmatmul.mubr.bf16.gmra.mrb[0].mxu0 %v547
      %v663 = vpop.f32.mrb[0].mxu0
      %v664 = vadd.f32 0.0, %v663
      %v665 = vpop.f32.mrb[0].mxu0
      %v666 = vadd.f32 0.0, %v665
      %v667 = vpop.f32.mrb[0].mxu0
      %v668 = vadd.f32 0.0, %v667
      %v669 = vpop.f32.mrb[0].mxu0
      %v670 = vadd.f32 0.0, %v669
      %671 = vmatprep.mubr.bf16.mxu0 0
      %672 = vmatmul.mubr.bf16.gmra.mrb[0].mxu0 %v550
      %v673 = vpop.f32.mrb[0].mxu0
      %v674 = vadd.f32 0.0, %v673
      %v675 = vpop.f32.mrb[0].mxu0
      %v676 = vadd.f32 0.0, %v675
      %v677 = vpop.f32.mrb[0].mxu0
      %v678 = vadd.f32 0.0, %v677
      %v679 = vpop.f32.mrb[0].mxu0
      %v680 = vadd.f32 0.0, %v679
      %681 = vmatprep.mubr.bf16.mxu0 0
      %682 = vmatmul.mubr.bf16.gmra.mrb[0].mxu0 %v553
      %v683 = vpop.f32.mrb[0].mxu0
      %v684 = vadd.f32 0.0, %v683
      %v685 = vpop.f32.mrb[0].mxu0
      %v686 = vadd.f32 0.0, %v685
      %v687 = vpop.f32.mrb[0].mxu0
      %v688 = vadd.f32 0.0, %v687
      %v689 = vpop.f32.mrb[0].mxu0
      %v690 = vadd.f32 0.0, %v689
      %691 = vmatprep.mubr.bf16.mxu0 0
      %692 = vmatmul.mubr.bf16.gmra.mrb[0].mxu0 %v556
      %v693 = vpop.f32.mrb[0].mxu0
      %v694 = vadd.f32 0.0, %v693
      %v695 = vpop.f32.mrb[0].mxu0
      %v696 = vadd.f32 0.0, %v695
      %v697 = vpop.f32.mrb[0].mxu0
      %v698 = vadd.f32 0.0, %v697
      %v699 = vpop.f32.mrb[0].mxu0
      %v700 = vadd.f32 0.0, %v699
      %701 = vmatprep.mubr.bf16.mxu0 0
      %702 = vmatmul.mubr.bf16.gmra.mrb[0].mxu0 %v559
      %v703 = vpop.f32.mrb[0].mxu0
      %v704 = vadd.f32 0.0, %v703
      %v705 = vpop.f32.mrb[0].mxu0
      %v706 = vadd.f32 0.0, %v705
      %v707 = vpop.f32.mrb[0].mxu0
      %v708 = vadd.f32 0.0, %v707
      %v709 = vpop.f32.mrb[0].mxu0
      %v710 = vadd.f32 0.0, %v709
      %711 = vmatprep.mubr.bf16.mxu0 0
      %712 = vmatmul.mubr.bf16.gmra.mrb[0].mxu0 %v562
      %v713 = vpop.f32.mrb[0].mxu0
      %v714 = vadd.f32 0.0, %v713
      %v715 = vpop.f32.mrb[0].mxu0
      %v716 = vadd.f32 0.0, %v715
      %v717 = vpop.f32.mrb[0].mxu0
      %v718 = vadd.f32 0.0, %v717
      %v719 = vpop.f32.mrb[0].mxu0
      %v720 = vadd.f32 0.0, %v719
      %721 = vmatprep.mubr.bf16.mxu0 0
      %722 = vmatmul.mubr.bf16.gmra.mrb[0].mxu0 %v565
      %v723 = vpop.f32.mrb[0].mxu0
      %v724 = vadd.f32 0.0, %v723
      %v725 = vpop.f32.mrb[0].mxu0
      %v726 = vadd.f32 0.0, %v725
      %v727 = vpop.f32.mrb[0].mxu0
      %v728 = vadd.f32 0.0, %v727
      %v729 = vpop.f32.mrb[0].mxu0
      %v730 = vadd.f32 0.0, %v729
      %731 = vmatprep.mubr.bf16.mxu0 0
      %732 = vmatmul.mubr.bf16.gmra.mrb[0].mxu0 %v568
      %v733 = vpop.f32.mrb[0].mxu0
      %v734 = vadd.f32 0.0, %v733
      %v735 = vpop.f32.mrb[0].mxu0
      %v736 = vadd.f32 0.0, %v735
      %v737 = vpop.f32.mrb[0].mxu0
      %v738 = vadd.f32 0.0, %v737
      %v739 = vpop.f32.mrb[0].mxu0
      %v740 = vadd.f32 0.0, %v739
      %741 = vmatprep.mubr.bf16.mxu0 0
      %742 = vmatmul.mubr.bf16.gmra.mrb[0].mxu0 %v571
      %v743 = vpop.f32.mrb[0].mxu0
      %v744 = vadd.f32 0.0, %v743
      %v745 = vpop.f32.mrb[0].mxu0
      %v746 = vadd.f32 0.0, %v745
      %v747 = vpop.f32.mrb[0].mxu0
      %v748 = vadd.f32 0.0, %v747
      %v749 = vpop.f32.mrb[0].mxu0
      %v750 = vadd.f32 0.0, %v749
      %751 = vmatprep.mubr.bf16.mxu0 0
      %752 = vmatmul.mubr.bf16.gmra.mrb[0].mxu0 %v574
      %v753 = vpop.f32.mrb[0].mxu0
      %v754 = vadd.f32 0.0, %v753
      %v755 = vpop.f32.mrb[0].mxu0
      %v756 = vadd.f32 0.0, %v755
      %v757 = vpop.f32.mrb[0].mxu0
      %v758 = vadd.f32 0.0, %v757
      %v759 = vpop.f32.mrb[0].mxu0
      %v760 = vadd.f32 0.0, %v759
      %761 = vmatprep.mubr.bf16.mxu0 0
      %762 = vmatmul.mubr.bf16.gmra.mrb[0].mxu0 %v577
      %v763 = vpop.f32.mrb[0].mxu0
      %v764 = vadd.f32 0.0, %v763
      %v765 = vpop.f32.mrb[0].mxu0
      %v766 = vadd.f32 0.0, %v765
      %v767 = vpop.f32.mrb[0].mxu0
      %v768 = vadd.f32 0.0, %v767
      %v769 = vpop.f32.mrb[0].mxu0
      %v770 = vadd.f32 0.0, %v769
      %771 = vdwg.mxu0
      %773 = vset.pattern.permute.xlu0 0
      %774 = vperm.xlu0 %773, %v337
      %v775 = vpop.permute.xlu0 %774
      %778 = vset.pattern.permute.xlu0 0
      %779 = vperm.xlu0 %778, %v338
      %v780 = vpop.permute.xlu0 %779
      %783 = vset.pattern.permute.xlu0 0
      %784 = vperm.xlu0 %783, %v339
      %v785 = vpop.permute.xlu0 %784
      %788 = vset.pattern.permute.xlu0 0
      %789 = vperm.xlu0 %788, %v340
      %v790 = vpop.permute.xlu0 %789
      %793 = vset.pattern.permute.xlu0 0
      %794 = vperm.xlu0 %793, %v341
      %v795 = vpop.permute.xlu0 %794
      %798 = vset.pattern.permute.xlu0 0
      %799 = vperm.xlu0 %798, %v342
      %v800 = vpop.permute.xlu0 %799
      %803 = vset.pattern.permute.xlu0 0
      %804 = vperm.xlu0 %803, %v343
      %v805 = vpop.permute.xlu0 %804
      %808 = vset.pattern.permute.xlu0 0
      %809 = vperm.xlu0 %808, %v344
      %v810 = vpop.permute.xlu0 %809
      %813 = vset.pattern.permute.xlu0 0
      %814 = vperm.xlu0 %813, %v345
      %v815 = vpop.permute.xlu0 %814
      %818 = vset.pattern.permute.xlu0 0
      %819 = vperm.xlu0 %818, %v346
      %v820 = vpop.permute.xlu0 %819
      %823 = vset.pattern.permute.xlu0 0
      %824 = vperm.xlu0 %823, %v347
      %v825 = vpop.permute.xlu0 %824
      %828 = vset.pattern.permute.xlu0 0
      %829 = vperm.xlu0 %828, %v348
      %v830 = vpop.permute.xlu0 %829
      %833 = vset.pattern.permute.xlu0 0
      %834 = vperm.xlu0 %833, %v349
      %v835 = vpop.permute.xlu0 %834
      %838 = vset.pattern.permute.xlu0 0
      %839 = vperm.xlu0 %838, %v350
      %v840 = vpop.permute.xlu0 %839
      %843 = vset.pattern.permute.xlu0 0
      %844 = vperm.xlu0 %843, %v351
      %v845 = vpop.permute.xlu0 %844
      %848 = vset.pattern.permute.xlu0 0
      %849 = vperm.xlu0 %848, %v352
      %v850 = vpop.permute.xlu0 %849
      %853 = vset.pattern.permute.xlu0 0
      %854 = vperm.xlu0 %853, %v353
      %v855 = vpop.permute.xlu0 %854
      %858 = vset.pattern.permute.xlu0 0
      %859 = vperm.xlu0 %858, %v354
      %v860 = vpop.permute.xlu0 %859
      %863 = vset.pattern.permute.xlu0 0
      %864 = vperm.xlu0 %863, %v355
      %v865 = vpop.permute.xlu0 %864
      %868 = vset.pattern.permute.xlu0 0
      %869 = vperm.xlu0 %868, %v356
      %v870 = vpop.permute.xlu0 %869
      %873 = vset.pattern.permute.xlu0 0
      %874 = vperm.xlu0 %873, %v357
      %v875 = vpop.permute.xlu0 %874
      %878 = vset.pattern.permute.xlu0 0
      %879 = vperm.xlu0 %878, %v358
      %v880 = vpop.permute.xlu0 %879
      %883 = vset.pattern.permute.xlu0 0
      %884 = vperm.xlu0 %883, %v359
      %v885 = vpop.permute.xlu0 %884
      %888 = vset.pattern.permute.xlu0 0
      %889 = vperm.xlu0 %888, %v360
      %v890 = vpop.permute.xlu0 %889
      %893 = vset.pattern.permute.xlu0 0
      %894 = vperm.xlu0 %893, %v361
      %v895 = vpop.permute.xlu0 %894
      %898 = vset.pattern.permute.xlu0 0
      %899 = vperm.xlu0 %898, %v362
      %v900 = vpop.permute.xlu0 %899
      %903 = vset.pattern.permute.xlu0 0
      %904 = vperm.xlu0 %903, %v363
      %v905 = vpop.permute.xlu0 %904
      %908 = vset.pattern.permute.xlu0 0
      %909 = vperm.xlu0 %908, %v364
      %v910 = vpop.permute.xlu0 %909
      %913 = vset.pattern.permute.xlu0 0
      %914 = vperm.xlu0 %913, %v365
      %v915 = vpop.permute.xlu0 %914
      %918 = vset.pattern.permute.xlu0 0
      %919 = vperm.xlu0 %918, %v366
      %v920 = vpop.permute.xlu0 %919
      %923 = vset.pattern.permute.xlu0 0
      %924 = vperm.xlu0 %923, %v367
      %v925 = vpop.permute.xlu0 %924
      %928 = vset.pattern.permute.xlu0 0
      %929 = vperm.xlu0 %928, %v368
      %v930 = vpop.permute.xlu0 %929
      %v932 = vadd.f32 %v775, %v614
      %v933 = vadd.f32 %v775, %v616
      %v934 = vadd.f32 %v780, %v618
      %v935 = vadd.f32 %v780, %v620
      %v936 = vadd.f32 %v785, %v624
      %v937 = vadd.f32 %v785, %v626
      %v938 = vadd.f32 %v790, %v628
      %v939 = vadd.f32 %v790, %v630
      %v940 = vadd.f32 %v795, %v634
      %v941 = vadd.f32 %v795, %v636
      %v942 = vadd.f32 %v800, %v638
      %v943 = vadd.f32 %v800, %v640
      %v944 = vadd.f32 %v805, %v644
      %v945 = vadd.f32 %v805, %v646
      %v946 = vadd.f32 %v810, %v648
      %v947 = vadd.f32 %v810, %v650
      %v948 = vadd.f32 %v815, %v654
      %v949 = vadd.f32 %v815, %v656
      %v950 = vadd.f32 %v820, %v658
      %v951 = vadd.f32 %v820, %v660
      %v952 = vadd.f32 %v825, %v664
      %v953 = vadd.f32 %v825, %v666
      %v954 = vadd.f32 %v830, %v668
      %v955 = vadd.f32 %v830, %v670
      %v956 = vadd.f32 %v835, %v674
      %v957 = vadd.f32 %v835, %v676
      %v958 = vadd.f32 %v840, %v678
      %v959 = vadd.f32 %v840, %v680
      %v960 = vadd.f32 %v845, %v684
      %v961 = vadd.f32 %v845, %v686
      %v962 = vadd.f32 %v850, %v688
      %v963 = vadd.f32 %v850, %v690
      %v964 = vadd.f32 %v855, %v694
      %v965 = vadd.f32 %v855, %v696
      %v966 = vadd.f32 %v860, %v698
      %v967 = vadd.f32 %v860, %v700
      %v968 = vadd.f32 %v865, %v704
      %v969 = vadd.f32 %v865, %v706
      %v970 = vadd.f32 %v870, %v708
      %v971 = vadd.f32 %v870, %v710
      %v972 = vadd.f32 %v875, %v714
      %v973 = vadd.f32 %v875, %v716
      %v974 = vadd.f32 %v880, %v718
      %v975 = vadd.f32 %v880, %v720
      %v976 = vadd.f32 %v885, %v724
      %v977 = vadd.f32 %v885, %v726
      %v978 = vadd.f32 %v890, %v728
      %v979 = vadd.f32 %v890, %v730
      %v980 = vadd.f32 %v895, %v734
      %v981 = vadd.f32 %v895, %v736
      %v982 = vadd.f32 %v900, %v738
      %v983 = vadd.f32 %v900, %v740
      %v984 = vadd.f32 %v905, %v744
      %v985 = vadd.f32 %v905, %v746
      %v986 = vadd.f32 %v910, %v748
      %v987 = vadd.f32 %v910, %v750
      %v988 = vadd.f32 %v915, %v754
      %v989 = vadd.f32 %v915, %v756
      %v990 = vadd.f32 %v920, %v758
      %v991 = vadd.f32 %v920, %v760
      %v992 = vadd.f32 %v925, %v764
      %v993 = vadd.f32 %v925, %v766
      %v994 = vadd.f32 %v930, %v768
      %v995 = vadd.f32 %v930, %v770
      %v996 = vpack.c.bf16 %v934, %v932
      %v997 = vpack.c.bf16 %v935, %v933
      %v998 = vpack.c.bf16 %v938, %v936
      %v999 = vpack.c.bf16 %v939, %v937
      %v1000 = vpack.c.bf16 %v942, %v940
      %v1001 = vpack.c.bf16 %v943, %v941
      %v1002 = vpack.c.bf16 %v946, %v944
      %v1003 = vpack.c.bf16 %v947, %v945
      %v1004 = vpack.c.bf16 %v950, %v948
      %v1005 = vpack.c.bf16 %v951, %v949
      %v1006 = vpack.c.bf16 %v954, %v952
      %v1007 = vpack.c.bf16 %v955, %v953
      %v1008 = vpack.c.bf16 %v958, %v956
      %v1009 = vpack.c.bf16 %v959, %v957
      %v1010 = vpack.c.bf16 %v962, %v960
      %v1011 = vpack.c.bf16 %v963, %v961
      %v1012 = vpack.c.bf16 %v966, %v964
      %v1013 = vpack.c.bf16 %v967, %v965
      %v1014 = vpack.c.bf16 %v970, %v968
      %v1015 = vpack.c.bf16 %v971, %v969
      %v1016 = vpack.c.bf16 %v974, %v972
      %v1017 = vpack.c.bf16 %v975, %v973
      %v1018 = vpack.c.bf16 %v978, %v976
      %v1019 = vpack.c.bf16 %v979, %v977
      %v1020 = vpack.c.bf16 %v982, %v980
      %v1021 = vpack.c.bf16 %v983, %v981
      %v1022 = vpack.c.bf16 %v986, %v984
      %v1023 = vpack.c.bf16 %v987, %v985
      %v1024 = vpack.c.bf16 %v990, %v988
      %v1025 = vpack.c.bf16 %v991, %v989
      %v1026 = vpack.c.bf16 %v994, %v992
      %v1027 = vpack.c.bf16 %v995, %v993
      %v1028 = vmax.bf16 %v996, 0
      %v1029 = vmax.bf16 %v997, 0
      %v1030 = vmax.bf16 %v998, 0
      %v1031 = vmax.bf16 %v999, 0
      %v1032 = vmax.bf16 %v1000, 0
      %v1033 = vmax.bf16 %v1001, 0
      %v1034 = vmax.bf16 %v1002, 0
      %v1035 = vmax.bf16 %v1003, 0
      %v1036 = vmax.bf16 %v1004, 0
      %v1037 = vmax.bf16 %v1005, 0
      %v1038 = vmax.bf16 %v1006, 0
      %v1039 = vmax.bf16 %v1007, 0
      %v1040 = vmax.bf16 %v1008, 0
      %v1041 = vmax.bf16 %v1009, 0
      %v1042 = vmax.bf16 %v1010, 0
      %v1043 = vmax.bf16 %v1011, 0
      %v1044 = vmax.bf16 %v1012, 0
      %v1045 = vmax.bf16 %v1013, 0
      %v1046 = vmax.bf16 %v1014, 0
      %v1047 = vmax.bf16 %v1015, 0
      %v1048 = vmax.bf16 %v1016, 0
      %v1049 = vmax.bf16 %v1017, 0
      %v1050 = vmax.bf16 %v1018, 0
      %v1051 = vmax.bf16 %v1019, 0
      %v1052 = vmax.bf16 %v1020, 0
      %v1053 = vmax.bf16 %v1021, 0
      %v1054 = vmax.bf16 %v1022, 0
      %v1055 = vmax.bf16 %v1023, 0
      %v1056 = vmax.bf16 %v1024, 0
      %v1057 = vmax.bf16 %v1025, 0
      %v1058 = vmax.bf16 %v1026, 0
      %v1059 = vmax.bf16 %v1027, 0
      %v1060 = vld [vmem:[%s3] sm:$0xff]
      %v1061 = vld [vmem:[%s3 + $0x8] sm:$0xff]
      %v1062 = vld [vmem:[%s3 + $0x10] sm:$0xff]
      %v1063 = vld [vmem:[%s3 + $0x18] sm:$0xff]
      %v1064 = vld [vmem:[%s3 + $0x20] sm:$0xff]
      %v1065 = vld [vmem:[%s3 + $0x28] sm:$0xff]
      %v1066 = vld [vmem:[%s3 + $0x30] sm:$0xff]
      %v1067 = vld [vmem:[%s3 + $0x38] sm:$0xff]
      %v1068 = vld [vmem:[%s3 + $0x40] sm:$0xff]
      %v1069 = vld [vmem:[%s3 + $0x48] sm:$0xff]
      %v1070 = vld [vmem:[%s3 + $0x50] sm:$0xff]
      %v1071 = vld [vmem:[%s3 + $0x58] sm:$0xff]
      %v1072 = vld [vmem:[%s3 + $0x60] sm:$0xff]
      %v1073 = vld [vmem:[%s3 + $0x68] sm:$0xff]
      %v1074 = vld [vmem:[%s3 + $0x70] sm:$0xff]
      %v1075 = vld [vmem:[%s3 + $0x78] sm:$0xff]
      %v1076 = vld [vmem:[%s3 + $0x80] sm:$0xff]
      %v1077 = vld [vmem:[%s3 + $0x88] sm:$0xff]
      %v1078 = vld [vmem:[%s3 + $0x90] sm:$0xff]
      %v1079 = vld [vmem:[%s3 + $0x98] sm:$0xff]
      %v1080 = vld [vmem:[%s3 + $0xa0] sm:$0xff]
      %v1081 = vld [vmem:[%s3 + $0xa8] sm:$0xff]
      %v1082 = vld [vmem:[%s3 + $0xb0] sm:$0xff]
      %v1083 = vld [vmem:[%s3 + $0xb8] sm:$0xff]
      %v1084 = vld [vmem:[%s3 + $0xc0] sm:$0xff]
      %v1085 = vld [vmem:[%s3 + $0xc8] sm:$0xff]
      %v1086 = vld [vmem:[%s3 + $0xd0] sm:$0xff]
      %v1087 = vld [vmem:[%s3 + $0xd8] sm:$0xff]
      %v1088 = vld [vmem:[%s3 + $0xe0] sm:$0xff]
      %v1089 = vld [vmem:[%s3 + $0xe8] sm:$0xff]
      %v1090 = vld [vmem:[%s3 + $0xf0] sm:$0xff]
      %v1091 = vld [vmem:[%s3 + $0xf8] sm:$0xff]
      %1092 = vset.pattern.permute.xlu0 1
      %1093 = vperm.xlu0 %1092, %v337
      %v1094 = vpop.permute.xlu0 %1093
      %1096 = vset.pattern.permute.xlu0 1
      %1097 = vperm.xlu0 %1096, %v338
      %v1098 = vpop.permute.xlu0 %1097
      %1100 = vset.pattern.permute.xlu0 1
      %1101 = vperm.xlu0 %1100, %v339
      %v1102 = vpop.permute.xlu0 %1101
      %1104 = vset.pattern.permute.xlu0 1
      %1105 = vperm.xlu0 %1104, %v340
      %v1106 = vpop.permute.xlu0 %1105
      %1108 = vset.pattern.permute.xlu0 1
      %1109 = vperm.xlu0 %1108, %v341
      %v1110 = vpop.permute.xlu0 %1109
      %1112 = vset.pattern.permute.xlu0 1
      %1113 = vperm.xlu0 %1112, %v342
      %v1114 = vpop.permute.xlu0 %1113
      %1116 = vset.pattern.permute.xlu0 1
      %1117 = vperm.xlu0 %1116, %v343
      %v1118 = vpop.permute.xlu0 %1117
      %1120 = vset.pattern.permute.xlu0 1
      %1121 = vperm.xlu0 %1120, %v344
      %v1122 = vpop.permute.xlu0 %1121
      %1124 = vset.pattern.permute.xlu0 1
      %1125 = vperm.xlu0 %1124, %v345
      %v1126 = vpop.permute.xlu0 %1125
      %1128 = vset.pattern.permute.xlu0 1
      %1129 = vperm.xlu0 %1128, %v346
      %v1130 = vpop.permute.xlu0 %1129
      %1132 = vset.pattern.permute.xlu0 1
      %1133 = vperm.xlu0 %1132, %v347
      %v1134 = vpop.permute.xlu0 %1133
      %1136 = vset.pattern.permute.xlu0 1
      %1137 = vperm.xlu0 %1136, %v348
      %v1138 = vpop.permute.xlu0 %1137
      %1140 = vset.pattern.permute.xlu0 1
      %1141 = vperm.xlu0 %1140, %v349
      %v1142 = vpop.permute.xlu0 %1141
      %1144 = vset.pattern.permute.xlu0 1
      %1145 = vperm.xlu0 %1144, %v350
      %v1146 = vpop.permute.xlu0 %1145
      %1148 = vset.pattern.permute.xlu0 1
      %1149 = vperm.xlu0 %1148, %v351
      %v1150 = vpop.permute.xlu0 %1149
      %1152 = vset.pattern.permute.xlu0 1
      %1153 = vperm.xlu0 %1152, %v352
      %v1154 = vpop.permute.xlu0 %1153
      %1156 = vset.pattern.permute.xlu0 1
      %1157 = vperm.xlu0 %1156, %v353
      %v1158 = vpop.permute.xlu0 %1157
      %1160 = vset.pattern.permute.xlu0 1
      %1161 = vperm.xlu0 %1160, %v354
      %v1162 = vpop.permute.xlu0 %1161
      %1164 = vset.pattern.permute.xlu0 1
      %1165 = vperm.xlu0 %1164, %v355
      %v1166 = vpop.permute.xlu0 %1165
      %1168 = vset.pattern.permute.xlu0 1
      %1169 = vperm.xlu0 %1168, %v356
      %v1170 = vpop.permute.xlu0 %1169
      %1172 = vset.pattern.permute.xlu0 1
      %1173 = vperm.xlu0 %1172, %v357
      %v1174 = vpop.permute.xlu0 %1173
      %1176 = vset.pattern.permute.xlu0 1
      %1177 = vperm.xlu0 %1176, %v358
      %v1178 = vpop.permute.xlu0 %1177
      %1180 = vset.pattern.permute.xlu0 1
      %1181 = vperm.xlu0 %1180, %v359
      %v1182 = vpop.permute.xlu0 %1181
      %1184 = vset.pattern.permute.xlu0 1
      %1185 = vperm.xlu0 %1184, %v360
      %v1186 = vpop.permute.xlu0 %1185
      %1188 = vset.pattern.permute.xlu0 1
      %1189 = vperm.xlu0 %1188, %v361
      %v1190 = vpop.permute.xlu0 %1189
      %1192 = vset.pattern.permute.xlu0 1
      %1193 = vperm.xlu0 %1192, %v362
      %v1194 = vpop.permute.xlu0 %1193
      %1196 = vset.pattern.permute.xlu0 1
      %1197 = vperm.xlu0 %1196, %v363
      %v1198 = vpop.permute.xlu0 %1197
      %1200 = vset.pattern.permute.xlu0 1
      %1201 = vperm.xlu0 %1200, %v364
      %v1202 = vpop.permute.xlu0 %1201
      %1204 = vset.pattern.permute.xlu0 1
      %1205 = vperm.xlu0 %1204, %v365
      %v1206 = vpop.permute.xlu0 %1205
      %1208 = vset.pattern.permute.xlu0 1
      %1209 = vperm.xlu0 %1208, %v366
      %v1210 = vpop.permute.xlu0 %1209
      %1212 = vset.pattern.permute.xlu0 1
      %1213 = vperm.xlu0 %1212, %v367
      %v1214 = vpop.permute.xlu0 %1213
      %1216 = vset.pattern.permute.xlu0 1
      %1217 = vperm.xlu0 %1216, %v368
      %v1218 = vpop.permute.xlu0 %1217
      %v1252 = vunpack.c.l.b16 %v1060
      %v1253 = vunpack.c.h.b16 %v1060
      %v1254 = vunpack.c.l.b16 %v1061
      %v1255 = vunpack.c.h.b16 %v1061
      %v1256 = vunpack.c.l.b16 %v1062
      %v1257 = vunpack.c.h.b16 %v1062
      %v1258 = vunpack.c.l.b16 %v1063
      %v1259 = vunpack.c.h.b16 %v1063
      %v1260 = vunpack.c.l.b16 %v1064
      %v1261 = vunpack.c.h.b16 %v1064
      %v1262 = vunpack.c.l.b16 %v1065
      %v1263 = vunpack.c.h.b16 %v1065
      %v1264 = vunpack.c.l.b16 %v1066
      %v1265 = vunpack.c.h.b16 %v1066
      %v1266 = vunpack.c.l.b16 %v1067
      %v1267 = vunpack.c.h.b16 %v1067
      %v1268 = vunpack.c.l.b16 %v1068
      %v1269 = vunpack.c.h.b16 %v1068
      %v1270 = vunpack.c.l.b16 %v1069
      %v1271 = vunpack.c.h.b16 %v1069
      %v1272 = vunpack.c.l.b16 %v1070
      %v1273 = vunpack.c.h.b16 %v1070
      %v1274 = vunpack.c.l.b16 %v1071
      %v1275 = vunpack.c.h.b16 %v1071
      %v1276 = vunpack.c.l.b16 %v1072
      %v1277 = vunpack.c.h.b16 %v1072
      %v1278 = vunpack.c.l.b16 %v1073
      %v1279 = vunpack.c.h.b16 %v1073
      %v1280 = vunpack.c.l.b16 %v1074
      %v1281 = vunpack.c.h.b16 %v1074
      %v1282 = vunpack.c.l.b16 %v1075
      %v1283 = vunpack.c.h.b16 %v1075
      %v1284 = vunpack.c.l.b16 %v1076
      %v1285 = vunpack.c.h.b16 %v1076
      %v1286 = vunpack.c.l.b16 %v1077
      %v1287 = vunpack.c.h.b16 %v1077
      %v1288 = vunpack.c.l.b16 %v1078
      %v1289 = vunpack.c.h.b16 %v1078
      %v1290 = vunpack.c.l.b16 %v1079
      %v1291 = vunpack.c.h.b16 %v1079
      %v1292 = vunpack.c.l.b16 %v1080
      %v1293 = vunpack.c.h.b16 %v1080
      %v1294 = vunpack.c.l.b16 %v1081
      %v1295 = vunpack.c.h.b16 %v1081
      %v1296 = vunpack.c.l.b16 %v1082
      %v1297 = vunpack.c.h.b16 %v1082
      %v1298 = vunpack.c.l.b16 %v1083
      %v1299 = vunpack.c.h.b16 %v1083
      %v1300 = vunpack.c.l.b16 %v1084
      %v1301 = vunpack.c.h.b16 %v1084
      %v1302 = vunpack.c.l.b16 %v1085
      %v1303 = vunpack.c.h.b16 %v1085
      %v1304 = vunpack.c.l.b16 %v1086
      %v1305 = vunpack.c.h.b16 %v1086
      %v1306 = vunpack.c.l.b16 %v1087
      %v1307 = vunpack.c.h.b16 %v1087
      %v1308 = vunpack.c.l.b16 %v1088
      %v1309 = vunpack.c.h.b16 %v1088
      %v1310 = vunpack.c.l.b16 %v1089
      %v1311 = vunpack.c.h.b16 %v1089
      %v1312 = vunpack.c.l.b16 %v1090
      %v1313 = vunpack.c.h.b16 %v1090
      %v1314 = vunpack.c.l.b16 %v1091
      %v1315 = vunpack.c.h.b16 %v1091
      %v1316 = vpack.c.b16 %v1254, %v1252
      %v1317 = vpack.c.b16 %v1255, %v1253
      %v1318 = vpack.c.b16 %v1258, %v1256
      %v1319 = vpack.c.b16 %v1259, %v1257
      %v1320 = vpack.c.b16 %v1262, %v1260
      %v1321 = vpack.c.b16 %v1263, %v1261
      %v1322 = vpack.c.b16 %v1266, %v1264
      %v1323 = vpack.c.b16 %v1267, %v1265
      %v1324 = vpack.c.b16 %v1270, %v1268
      %v1325 = vpack.c.b16 %v1271, %v1269
      %v1326 = vpack.c.b16 %v1274, %v1272
      %v1327 = vpack.c.b16 %v1275, %v1273
      %v1328 = vpack.c.b16 %v1278, %v1276
      %v1329 = vpack.c.b16 %v1279, %v1277
      %v1330 = vpack.c.b16 %v1282, %v1280
      %v1331 = vpack.c.b16 %v1283, %v1281
      %v1332 = vpack.c.b16 %v1286, %v1284
      %v1333 = vpack.c.b16 %v1287, %v1285
      %v1334 = vpack.c.b16 %v1290, %v1288
      %v1335 = vpack.c.b16 %v1291, %v1289
      %v1336 = vpack.c.b16 %v1294, %v1292
      %v1337 = vpack.c.b16 %v1295, %v1293
      %v1338 = vpack.c.b16 %v1298, %v1296
      %v1339 = vpack.c.b16 %v1299, %v1297
      %v1340 = vpack.c.b16 %v1302, %v1300
      %v1341 = vpack.c.b16 %v1303, %v1301
      %v1342 = vpack.c.b16 %v1306, %v1304
      %v1343 = vpack.c.b16 %v1307, %v1305
      %v1344 = vpack.c.b16 %v1310, %v1308
      %v1345 = vpack.c.b16 %v1311, %v1309
      %v1346 = vpack.c.b16 %v1314, %v1312
      %v1347 = vpack.c.b16 %v1315, %v1313
      %1380 = vmatprep.subr.bf16.mxu0 %v1029
      %1381 = vmatpush1.bf16.msra.mxu0 %v1028
      %1382 = vmatprep.subr.bf16.mxu0 %v1031
      %1383 = vmatpush1.bf16.msra.mxu0 %v1030
      %1384 = vmatprep.subr.bf16.mxu0 %v1033
      %1385 = vmatpush1.bf16.msra.mxu0 %v1032
      %1386 = vmatprep.subr.bf16.mxu0 %v1035
      %1387 = vmatpush1.bf16.msra.mxu0 %v1034
      %1388 = vmatprep.subr.bf16.mxu0 %v1037
      %1389 = vmatpush1.bf16.msra.mxu0 %v1036
      %1390 = vmatprep.subr.bf16.mxu0 %v1039
      %1391 = vmatpush1.bf16.msra.mxu0 %v1038
      %1392 = vmatprep.subr.bf16.mxu0 %v1041
      %1393 = vmatpush1.bf16.msra.mxu0 %v1040
      %1394 = vmatprep.subr.bf16.mxu0 %v1043
      %1395 = vmatpush1.bf16.msra.mxu0 %v1042
      %1396 = vmatprep.subr.bf16.mxu0 %v1045
      %1397 = vmatpush1.bf16.msra.mxu0 %v1044
      %1398 = vmatprep.subr.bf16.mxu0 %v1047
      %1399 = vmatpush1.bf16.msra.mxu0 %v1046
      %1400 = vmatprep.subr.bf16.mxu0 %v1049
      %1401 = vmatpush1.bf16.msra.mxu0 %v1048
      %1402 = vmatprep.subr.bf16.mxu0 %v1051
      %1403 = vmatpush1.bf16.msra.mxu0 %v1050
      %1404 = vmatprep.subr.bf16.mxu0 %v1053
      %1405 = vmatpush1.bf16.msra.mxu0 %v1052
      %1406 = vmatprep.subr.bf16.mxu0 %v1055
      %1407 = vmatpush1.bf16.msra.mxu0 %v1054
      %1408 = vmatprep.subr.bf16.mxu0 %v1057
      %1409 = vmatpush1.bf16.msra.mxu0 %v1056
      %1410 = vmatprep.subr.bf16.mxu0 %v1059
      %1411 = vmatpush1.bf16.msra.mxu0 %v1058
      %1412 = vmatprep.mubr.bf16.mxu0 %v1317
      %1413 = vmatmul.mubr.bf16.gmra.mrb[0].mxu0 %v1316
      %v1414 = vpop.f32.mrb[0].mxu0
      %v1415 = vadd.f32 %v1094, %v1414
      %v1416 = vpop.f32.mrb[0].mxu0
      %v1417 = vadd.f32 %v1094, %v1416
      %v1418 = vpop.f32.mrb[0].mxu0
      %v1419 = vadd.f32 %v1098, %v1418
      %v1420 = vpop.f32.mrb[0].mxu0
      %v1421 = vadd.f32 %v1098, %v1420
      %1422 = vmatprep.mubr.bf16.mxu0 %v1319
      %1423 = vmatmul.mubr.bf16.gmra.mrb[0].mxu0 %v1318
      %v1424 = vpop.f32.mrb[0].mxu0
      %v1425 = vadd.f32 %v1102, %v1424
      %v1426 = vpop.f32.mrb[0].mxu0
      %v1427 = vadd.f32 %v1102, %v1426
      %v1428 = vpop.f32.mrb[0].mxu0
      %v1429 = vadd.f32 %v1106, %v1428
      %v1430 = vpop.f32.mrb[0].mxu0
      %v1431 = vadd.f32 %v1106, %v1430
      %1432 = vmatprep.mubr.bf16.mxu0 %v1321
      %1433 = vmatmul.mubr.bf16.gmra.mrb[0].mxu0 %v1320
      %v1434 = vpop.f32.mrb[0].mxu0
      %v1435 = vadd.f32 %v1110, %v1434
      %v1436 = vpop.f32.mrb[0].mxu0
      %v1437 = vadd.f32 %v1110, %v1436
      %v1438 = vpop.f32.mrb[0].mxu0
      %v1439 = vadd.f32 %v1114, %v1438
      %v1440 = vpop.f32.mrb[0].mxu0
      %v1441 = vadd.f32 %v1114, %v1440
      %1442 = vmatprep.mubr.bf16.mxu0 %v1323
      %1443 = vmatmul.mubr.bf16.gmra.mrb[0].mxu0 %v1322
      %v1444 = vpop.f32.mrb[0].mxu0
      %v1445 = vadd.f32 %v1118, %v1444
      %v1446 = vpop.f32.mrb[0].mxu0
      %v1447 = vadd.f32 %v1118, %v1446
      %v1448 = vpop.f32.mrb[0].mxu0
      %v1449 = vadd.f32 %v1122, %v1448
      %v1450 = vpop.f32.mrb[0].mxu0
      %v1451 = vadd.f32 %v1122, %v1450
      %1452 = vmatprep.mubr.bf16.mxu0 %v1325
      %1453 = vmatmul.mubr.bf16.gmra.mrb[0].mxu0 %v1324
      %v1454 = vpop.f32.mrb[0].mxu0
      %v1455 = vadd.f32 %v1126, %v1454
      %v1456 = vpop.f32.mrb[0].mxu0
      %v1457 = vadd.f32 %v1126, %v1456
      %v1458 = vpop.f32.mrb[0].mxu0
      %v1459 = vadd.f32 %v1130, %v1458
      %v1460 = vpop.f32.mrb[0].mxu0
      %v1461 = vadd.f32 %v1130, %v1460
      %1462 = vmatprep.mubr.bf16.mxu0 %v1327
      %1463 = vmatmul.mubr.bf16.gmra.mrb[0].mxu0 %v1326
      %v1464 = vpop.f32.mrb[0].mxu0
      %v1465 = vadd.f32 %v1134, %v1464
      %v1466 = vpop.f32.mrb[0].mxu0
      %v1467 = vadd.f32 %v1134, %v1466
      %v1468 = vpop.f32.mrb[0].mxu0
      %v1469 = vadd.f32 %v1138, %v1468
      %v1470 = vpop.f32.mrb[0].mxu0
      %v1471 = vadd.f32 %v1138, %v1470
      %1472 = vmatprep.mubr.bf16.mxu0 %v1329
      %1473 = vmatmul.mubr.bf16.gmra.mrb[0].mxu0 %v1328
      %v1474 = vpop.f32.mrb[0].mxu0
      %v1475 = vadd.f32 %v1142, %v1474
      %v1476 = vpop.f32.mrb[0].mxu0
      %v1477 = vadd.f32 %v1142, %v1476
      %v1478 = vpop.f32.mrb[0].mxu0
      %v1479 = vadd.f32 %v1146, %v1478
      %v1480 = vpop.f32.mrb[0].mxu0
      %v1481 = vadd.f32 %v1146, %v1480
      %1482 = vmatprep.mubr.bf16.mxu0 %v1331
      %1483 = vmatmul.mubr.bf16.gmra.mrb[0].mxu0 %v1330
      %v1484 = vpop.f32.mrb[0].mxu0
      %v1485 = vadd.f32 %v1150, %v1484
      %v1486 = vpop.f32.mrb[0].mxu0
      %v1487 = vadd.f32 %v1150, %v1486
      %v1488 = vpop.f32.mrb[0].mxu0
      %v1489 = vadd.f32 %v1154, %v1488
      %v1490 = vpop.f32.mrb[0].mxu0
      %v1491 = vadd.f32 %v1154, %v1490
      %1492 = vmatprep.mubr.bf16.mxu0 %v1333
      %1493 = vmatmul.mubr.bf16.gmra.mrb[0].mxu0 %v1332
      %v1494 = vpop.f32.mrb[0].mxu0
      %v1495 = vadd.f32 %v1158, %v1494
      %v1496 = vpop.f32.mrb[0].mxu0
      %v1497 = vadd.f32 %v1158, %v1496
      %v1498 = vpop.f32.mrb[0].mxu0
      %v1499 = vadd.f32 %v1162, %v1498
      %v1500 = vpop.f32.mrb[0].mxu0
      %v1501 = vadd.f32 %v1162, %v1500
      %1502 = vmatprep.mubr.bf16.mxu0 %v1335
      %1503 = vmatmul.mubr.bf16.gmra.mrb[0].mxu0 %v1334
      %v1504 = vpop.f32.mrb[0].mxu0
      %v1505 = vadd.f32 %v1166, %v1504
      %v1506 = vpop.f32.mrb[0].mxu0
      %v1507 = vadd.f32 %v1166, %v1506
      %v1508 = vpop.f32.mrb[0].mxu0
      %v1509 = vadd.f32 %v1170, %v1508
      %v1510 = vpop.f32.mrb[0].mxu0
      %v1511 = vadd.f32 %v1170, %v1510
      %1512 = vmatprep.mubr.bf16.mxu0 %v1337
      %1513 = vmatmul.mubr.bf16.gmra.mrb[0].mxu0 %v1336
      %v1514 = vpop.f32.mrb[0].mxu0
      %v1515 = vadd.f32 %v1174, %v1514
      %v1516 = vpop.f32.mrb[0].mxu0
      %v1517 = vadd.f32 %v1174, %v1516
      %v1518 = vpop.f32.mrb[0].mxu0
      %v1519 = vadd.f32 %v1178, %v1518
      %v1520 = vpop.f32.mrb[0].mxu0
      %v1521 = vadd.f32 %v1178, %v1520
      %1522 = vmatprep.mubr.bf16.mxu0 %v1339
      %1523 = vmatmul.mubr.bf16.gmra.mrb[0].mxu0 %v1338
      %v1524 = vpop.f32.mrb[0].mxu0
      %v1525 = vadd.f32 %v1182, %v1524
      %v1526 = vpop.f32.mrb[0].mxu0
      %v1527 = vadd.f32 %v1182, %v1526
      %v1528 = vpop.f32.mrb[0].mxu0
      %v1529 = vadd.f32 %v1186, %v1528
      %v1530 = vpop.f32.mrb[0].mxu0
      %v1531 = vadd.f32 %v1186, %v1530
      %1532 = vmatprep.mubr.bf16.mxu0 %v1341
      %1533 = vmatmul.mubr.bf16.gmra.mrb[0].mxu0 %v1340
      %v1534 = vpop.f32.mrb[0].mxu0
      %v1535 = vadd.f32 %v1190, %v1534
      %v1536 = vpop.f32.mrb[0].mxu0
      %v1537 = vadd.f32 %v1190, %v1536
      %v1538 = vpop.f32.mrb[0].mxu0
      %v1539 = vadd.f32 %v1194, %v1538
      %v1540 = vpop.f32.mrb[0].mxu0
      %v1541 = vadd.f32 %v1194, %v1540
      %1542 = vmatprep.mubr.bf16.mxu0 %v1343
      %1543 = vmatmul.mubr.bf16.gmra.mrb[0].mxu0 %v1342
      %v1544 = vpop.f32.mrb[0].mxu0
      %v1545 = vadd.f32 %v1198, %v1544
      %v1546 = vpop.f32.mrb[0].mxu0
      %v1547 = vadd.f32 %v1198, %v1546
      %v1548 = vpop.f32.mrb[0].mxu0
      %v1549 = vadd.f32 %v1202, %v1548
      %v1550 = vpop.f32.mrb[0].mxu0
      %v1551 = vadd.f32 %v1202, %v1550
      %1552 = vmatprep.mubr.bf16.mxu0 %v1345
      %1553 = vmatmul.mubr.bf16.gmra.mrb[0].mxu0 %v1344
      %v1554 = vpop.f32.mrb[0].mxu0
      %v1555 = vadd.f32 %v1206, %v1554
      %v1556 = vpop.f32.mrb[0].mxu0
      %v1557 = vadd.f32 %v1206, %v1556
      %v1558 = vpop.f32.mrb[0].mxu0
      %v1559 = vadd.f32 %v1210, %v1558
      %v1560 = vpop.f32.mrb[0].mxu0
      %v1561 = vadd.f32 %v1210, %v1560
      %1562 = vmatprep.mubr.bf16.mxu0 %v1347
      %1563 = vmatmul.mubr.bf16.gmra.mrb[0].mxu0 %v1346
      %v1564 = vpop.f32.mrb[0].mxu0
      %v1565 = vadd.f32 %v1214, %v1564
      %v1566 = vpop.f32.mrb[0].mxu0
      %v1567 = vadd.f32 %v1214, %v1566
      %v1568 = vpop.f32.mrb[0].mxu0
      %v1569 = vadd.f32 %v1218, %v1568
      %v1570 = vpop.f32.mrb[0].mxu0
      %v1571 = vadd.f32 %v1218, %v1570
      %1572 = vdwg.mxu0
      %v1573 = vpack.c.bf16 %v1419, %v1415
      %v1574 = vpack.c.bf16 %v1421, %v1417
      %v1575 = vpack.c.bf16 %v1429, %v1425
      %v1576 = vpack.c.bf16 %v1431, %v1427
      %v1577 = vpack.c.bf16 %v1439, %v1435
      %v1578 = vpack.c.bf16 %v1441, %v1437
      %v1579 = vpack.c.bf16 %v1449, %v1445
      %v1580 = vpack.c.bf16 %v1451, %v1447
      %v1581 = vpack.c.bf16 %v1459, %v1455
      %v1582 = vpack.c.bf16 %v1461, %v1457
      %v1583 = vpack.c.bf16 %v1469, %v1465
      %v1584 = vpack.c.bf16 %v1471, %v1467
      %v1585 = vpack.c.bf16 %v1479, %v1475
      %v1586 = vpack.c.bf16 %v1481, %v1477
      %v1587 = vpack.c.bf16 %v1489, %v1485
      %v1588 = vpack.c.bf16 %v1491, %v1487
      %v1589 = vpack.c.bf16 %v1499, %v1495
      %v1590 = vpack.c.bf16 %v1501, %v1497
      %v1591 = vpack.c.bf16 %v1509, %v1505
      %v1592 = vpack.c.bf16 %v1511, %v1507
      %v1593 = vpack.c.bf16 %v1519, %v1515
      %v1594 = vpack.c.bf16 %v1521, %v1517
      %v1595 = vpack.c.bf16 %v1529, %v1525
      %v1596 = vpack.c.bf16 %v1531, %v1527
      %v1597 = vpack.c.bf16 %v1539, %v1535
      %v1598 = vpack.c.bf16 %v1541, %v1537
      %v1599 = vpack.c.bf16 %v1549, %v1545
      %v1600 = vpack.c.bf16 %v1551, %v1547
      %v1601 = vpack.c.bf16 %v1559, %v1555
      %v1602 = vpack.c.bf16 %v1561, %v1557
      %v1603 = vpack.c.bf16 %v1569, %v1565
      %v1604 = vpack.c.bf16 %v1571, %v1567
      %v1605 = vmax.bf16 %v1573, 0
      %v1606 = vmax.bf16 %v1574, 0
      %v1607 = vmax.bf16 %v1575, 0
      %v1608 = vmax.bf16 %v1576, 0
      %v1609 = vmax.bf16 %v1577, 0
      %v1610 = vmax.bf16 %v1578, 0
      %v1611 = vmax.bf16 %v1579, 0
      %v1612 = vmax.bf16 %v1580, 0
      %v1613 = vmax.bf16 %v1581, 0
      %v1614 = vmax.bf16 %v1582, 0
      %v1615 = vmax.bf16 %v1583, 0
      %v1616 = vmax.bf16 %v1584, 0
      %v1617 = vmax.bf16 %v1585, 0
      %v1618 = vmax.bf16 %v1586, 0
      %v1619 = vmax.bf16 %v1587, 0
      %v1620 = vmax.bf16 %v1588, 0
      %v1621 = vmax.bf16 %v1589, 0
      %v1622 = vmax.bf16 %v1590, 0
      %v1623 = vmax.bf16 %v1591, 0
      %v1624 = vmax.bf16 %v1592, 0
      %v1625 = vmax.bf16 %v1593, 0
      %v1626 = vmax.bf16 %v1594, 0
      %v1627 = vmax.bf16 %v1595, 0
      %v1628 = vmax.bf16 %v1596, 0
      %v1629 = vmax.bf16 %v1597, 0
      %v1630 = vmax.bf16 %v1598, 0
      %v1631 = vmax.bf16 %v1599, 0
      %v1632 = vmax.bf16 %v1600, 0
      %v1633 = vmax.bf16 %v1601, 0
      %v1634 = vmax.bf16 %v1602, 0
      %v1635 = vmax.bf16 %v1603, 0
      %v1636 = vmax.bf16 %v1604, 0
      %v1637 = vld [vmem:[%s4] sm:$0xff]
      %v1638 = vld [vmem:[%s4 + $0x8] sm:$0xff]
      %v1639 = vld [vmem:[%s4 + $0x10] sm:$0xff]
      %v1640 = vld [vmem:[%s4 + $0x18] sm:$0xff]
      %v1641 = vld [vmem:[%s4 + $0x20] sm:$0xff]
      %v1642 = vld [vmem:[%s4 + $0x28] sm:$0xff]
      %v1643 = vld [vmem:[%s4 + $0x30] sm:$0xff]
      %v1644 = vld [vmem:[%s4 + $0x38] sm:$0xff]
      %v1645 = vld [vmem:[%s4 + $0x40] sm:$0xff]
      %v1646 = vld [vmem:[%s4 + $0x48] sm:$0xff]
      %v1647 = vld [vmem:[%s4 + $0x50] sm:$0xff]
      %v1648 = vld [vmem:[%s4 + $0x58] sm:$0xff]
      %v1649 = vld [vmem:[%s4 + $0x60] sm:$0xff]
      %v1650 = vld [vmem:[%s4 + $0x68] sm:$0xff]
      %v1651 = vld [vmem:[%s4 + $0x70] sm:$0xff]
      %v1652 = vld [vmem:[%s4 + $0x78] sm:$0xff]
      %v1653 = vld [vmem:[%s4 + $0x80] sm:$0xff]
      %v1654 = vld [vmem:[%s4 + $0x88] sm:$0xff]
      %v1655 = vld [vmem:[%s4 + $0x90] sm:$0xff]
      %v1656 = vld [vmem:[%s4 + $0x98] sm:$0xff]
      %v1657 = vld [vmem:[%s4 + $0xa0] sm:$0xff]
      %v1658 = vld [vmem:[%s4 + $0xa8] sm:$0xff]
      %v1659 = vld [vmem:[%s4 + $0xb0] sm:$0xff]
      %v1660 = vld [vmem:[%s4 + $0xb8] sm:$0xff]
      %v1661 = vld [vmem:[%s4 + $0xc0] sm:$0xff]
      %v1662 = vld [vmem:[%s4 + $0xc8] sm:$0xff]
      %v1663 = vld [vmem:[%s4 + $0xd0] sm:$0xff]
      %v1664 = vld [vmem:[%s4 + $0xd8] sm:$0xff]
      %v1665 = vld [vmem:[%s4 + $0xe0] sm:$0xff]
      %v1666 = vld [vmem:[%s4 + $0xe8] sm:$0xff]
      %v1667 = vld [vmem:[%s4 + $0xf0] sm:$0xff]
      %v1668 = vld [vmem:[%s4 + $0xf8] sm:$0xff]
      %1669 = vset.pattern.permute.xlu0 2
      %1670 = vperm.xlu0 %1669, %v337
      %v1671 = vpop.permute.xlu0 %1670
      %1673 = vset.pattern.permute.xlu0 2
      %1674 = vperm.xlu0 %1673, %v338
      %v1675 = vpop.permute.xlu0 %1674
      %1677 = vset.pattern.permute.xlu0 2
      %1678 = vperm.xlu0 %1677, %v339
      %v1679 = vpop.permute.xlu0 %1678
      %1681 = vset.pattern.permute.xlu0 2
      %1682 = vperm.xlu0 %1681, %v340
      %v1683 = vpop.permute.xlu0 %1682
      %1685 = vset.pattern.permute.xlu0 2
      %1686 = vperm.xlu0 %1685, %v341
      %v1687 = vpop.permute.xlu0 %1686
      %1689 = vset.pattern.permute.xlu0 2
      %1690 = vperm.xlu0 %1689, %v342
      %v1691 = vpop.permute.xlu0 %1690
      %1693 = vset.pattern.permute.xlu0 2
      %1694 = vperm.xlu0 %1693, %v343
      %v1695 = vpop.permute.xlu0 %1694
      %1697 = vset.pattern.permute.xlu0 2
      %1698 = vperm.xlu0 %1697, %v344
      %v1699 = vpop.permute.xlu0 %1698
      %1701 = vset.pattern.permute.xlu0 2
      %1702 = vperm.xlu0 %1701, %v345
      %v1703 = vpop.permute.xlu0 %1702
      %1705 = vset.pattern.permute.xlu0 2
      %1706 = vperm.xlu0 %1705, %v346
      %v1707 = vpop.permute.xlu0 %1706
      %1709 = vset.pattern.permute.xlu0 2
      %1710 = vperm.xlu0 %1709, %v347
      %v1711 = vpop.permute.xlu0 %1710
      %1713 = vset.pattern.permute.xlu0 2
      %1714 = vperm.xlu0 %1713, %v348
      %v1715 = vpop.permute.xlu0 %1714
      %1717 = vset.pattern.permute.xlu0 2
      %1718 = vperm.xlu0 %1717, %v349
      %v1719 = vpop.permute.xlu0 %1718
      %1721 = vset.pattern.permute.xlu0 2
      %1722 = vperm.xlu0 %1721, %v350
      %v1723 = vpop.permute.xlu0 %1722
      %1725 = vset.pattern.permute.xlu0 2
      %1726 = vperm.xlu0 %1725, %v351
      %v1727 = vpop.permute.xlu0 %1726
      %1729 = vset.pattern.permute.xlu0 2
      %1730 = vperm.xlu0 %1729, %v352
      %v1731 = vpop.permute.xlu0 %1730
      %1733 = vset.pattern.permute.xlu0 2
      %1734 = vperm.xlu0 %1733, %v353
      %v1735 = vpop.permute.xlu0 %1734
      %1737 = vset.pattern.permute.xlu0 2
      %1738 = vperm.xlu0 %1737, %v354
      %v1739 = vpop.permute.xlu0 %1738
      %1741 = vset.pattern.permute.xlu0 2
      %1742 = vperm.xlu0 %1741, %v355
      %v1743 = vpop.permute.xlu0 %1742
      %1745 = vset.pattern.permute.xlu0 2
      %1746 = vperm.xlu0 %1745, %v356
      %v1747 = vpop.permute.xlu0 %1746
      %1749 = vset.pattern.permute.xlu0 2
      %1750 = vperm.xlu0 %1749, %v357
      %v1751 = vpop.permute.xlu0 %1750
      %1753 = vset.pattern.permute.xlu0 2
      %1754 = vperm.xlu0 %1753, %v358
      %v1755 = vpop.permute.xlu0 %1754
      %1757 = vset.pattern.permute.xlu0 2
      %1758 = vperm.xlu0 %1757, %v359
      %v1759 = vpop.permute.xlu0 %1758
      %1761 = vset.pattern.permute.xlu0 2
      %1762 = vperm.xlu0 %1761, %v360
      %v1763 = vpop.permute.xlu0 %1762
      %1765 = vset.pattern.permute.xlu0 2
      %1766 = vperm.xlu0 %1765, %v361
      %v1767 = vpop.permute.xlu0 %1766
      %1769 = vset.pattern.permute.xlu0 2
      %1770 = vperm.xlu0 %1769, %v362
      %v1771 = vpop.permute.xlu0 %1770
      %1773 = vset.pattern.permute.xlu0 2
      %1774 = vperm.xlu0 %1773, %v363
      %v1775 = vpop.permute.xlu0 %1774
      %1777 = vset.pattern.permute.xlu0 2
      %1778 = vperm.xlu0 %1777, %v364
      %v1779 = vpop.permute.xlu0 %1778
      %1781 = vset.pattern.permute.xlu0 2
      %1782 = vperm.xlu0 %1781, %v365
      %v1783 = vpop.permute.xlu0 %1782
      %1785 = vset.pattern.permute.xlu0 2
      %1786 = vperm.xlu0 %1785, %v366
      %v1787 = vpop.permute.xlu0 %1786
      %1789 = vset.pattern.permute.xlu0 2
      %1790 = vperm.xlu0 %1789, %v367
      %v1791 = vpop.permute.xlu0 %1790
      %1793 = vset.pattern.permute.xlu0 2
      %1794 = vperm.xlu0 %1793, %v368
      %v1795 = vpop.permute.xlu0 %1794
      %v1829 = vunpack.c.l.b16 %v1637
      %v1830 = vunpack.c.h.b16 %v1637
      %v1831 = vunpack.c.l.b16 %v1638
      %v1832 = vunpack.c.h.b16 %v1638
      %v1833 = vunpack.c.l.b16 %v1639
      %v1834 = vunpack.c.h.b16 %v1639
      %v1835 = vunpack.c.l.b16 %v1640
      %v1836 = vunpack.c.h.b16 %v1640
      %v1837 = vunpack.c.l.b16 %v1641
      %v1838 = vunpack.c.h.b16 %v1641
      %v1839 = vunpack.c.l.b16 %v1642
      %v1840 = vunpack.c.h.b16 %v1642
      %v1841 = vunpack.c.l.b16 %v1643
      %v1842 = vunpack.c.h.b16 %v1643
      %v1843 = vunpack.c.l.b16 %v1644
      %v1844 = vunpack.c.h.b16 %v1644
      %v1845 = vunpack.c.l.b16 %v1645
      %v1846 = vunpack.c.h.b16 %v1645
      %v1847 = vunpack.c.l.b16 %v1646
      %v1848 = vunpack.c.h.b16 %v1646
      %v1849 = vunpack.c.l.b16 %v1647
      %v1850 = vunpack.c.h.b16 %v1647
      %v1851 = vunpack.c.l.b16 %v1648
      %v1852 = vunpack.c.h.b16 %v1648
      %v1853 = vunpack.c.l.b16 %v1649
      %v1854 = vunpack.c.h.b16 %v1649
      %v1855 = vunpack.c.l.b16 %v1650
      %v1856 = vunpack.c.h.b16 %v1650
      %v1857 = vunpack.c.l.b16 %v1651
      %v1858 = vunpack.c.h.b16 %v1651
      %v1859 = vunpack.c.l.b16 %v1652
      %v1860 = vunpack.c.h.b16 %v1652
      %v1861 = vunpack.c.l.b16 %v1653
      %v1862 = vunpack.c.h.b16 %v1653
      %v1863 = vunpack.c.l.b16 %v1654
      %v1864 = vunpack.c.h.b16 %v1654
      %v1865 = vunpack.c.l.b16 %v1655
      %v1866 = vunpack.c.h.b16 %v1655
      %v1867 = vunpack.c.l.b16 %v1656
      %v1868 = vunpack.c.h.b16 %v1656
      %v1869 = vunpack.c.l.b16 %v1657
      %v1870 = vunpack.c.h.b16 %v1657
      %v1871 = vunpack.c.l.b16 %v1658
      %v1872 = vunpack.c.h.b16 %v1658
      %v1873 = vunpack.c.l.b16 %v1659
      %v1874 = vunpack.c.h.b16 %v1659
      %v1875 = vunpack.c.l.b16 %v1660
      %v1876 = vunpack.c.h.b16 %v1660
      %v1877 = vunpack.c.l.b16 %v1661
      %v1878 = vunpack.c.h.b16 %v1661
      %v1879 = vunpack.c.l.b16 %v1662
      %v1880 = vunpack.c.h.b16 %v1662
      %v1881 = vunpack.c.l.b16 %v1663
      %v1882 = vunpack.c.h.b16 %v1663
      %v1883 = vunpack.c.l.b16 %v1664
      %v1884 = vunpack.c.h.b16 %v1664
      %v1885 = vunpack.c.l.b16 %v1665
      %v1886 = vunpack.c.h.b16 %v1665
      %v1887 = vunpack.c.l.b16 %v1666
      %v1888 = vunpack.c.h.b16 %v1666
      %v1889 = vunpack.c.l.b16 %v1667
      %v1890 = vunpack.c.h.b16 %v1667
      %v1891 = vunpack.c.l.b16 %v1668
      %v1892 = vunpack.c.h.b16 %v1668
      %v1893 = vpack.c.b16 %v1831, %v1829
      %v1894 = vpack.c.b16 %v1832, %v1830
      %v1895 = vpack.c.b16 %v1835, %v1833
      %v1896 = vpack.c.b16 %v1836, %v1834
      %v1897 = vpack.c.b16 %v1839, %v1837
      %v1898 = vpack.c.b16 %v1840, %v1838
      %v1899 = vpack.c.b16 %v1843, %v1841
      %v1900 = vpack.c.b16 %v1844, %v1842
      %v1901 = vpack.c.b16 %v1847, %v1845
      %v1902 = vpack.c.b16 %v1848, %v1846
      %v1903 = vpack.c.b16 %v1851, %v1849
      %v1904 = vpack.c.b16 %v1852, %v1850
      %v1905 = vpack.c.b16 %v1855, %v1853
      %v1906 = vpack.c.b16 %v1856, %v1854
      %v1907 = vpack.c.b16 %v1859, %v1857
      %v1908 = vpack.c.b16 %v1860, %v1858
      %v1909 = vpack.c.b16 %v1863, %v1861
      %v1910 = vpack.c.b16 %v1864, %v1862
      %v1911 = vpack.c.b16 %v1867, %v1865
      %v1912 = vpack.c.b16 %v1868, %v1866
      %v1913 = vpack.c.b16 %v1871, %v1869
      %v1914 = vpack.c.b16 %v1872, %v1870
      %v1915 = vpack.c.b16 %v1875, %v1873
      %v1916 = vpack.c.b16 %v1876, %v1874
      %v1917 = vpack.c.b16 %v1879, %v1877
      %v1918 = vpack.c.b16 %v1880, %v1878
      %v1919 = vpack.c.b16 %v1883, %v1881
      %v1920 = vpack.c.b16 %v1884, %v1882
      %v1921 = vpack.c.b16 %v1887, %v1885
      %v1922 = vpack.c.b16 %v1888, %v1886
      %v1923 = vpack.c.b16 %v1891, %v1889
      %v1924 = vpack.c.b16 %v1892, %v1890
      %1957 = vmatprep.subr.bf16.mxu0 %v1606
      %1958 = vmatpush1.bf16.msra.mxu0 %v1605
      %1959 = vmatprep.subr.bf16.mxu0 %v1608
      %1960 = vmatpush1.bf16.msra.mxu0 %v1607
      %1961 = vmatprep.subr.bf16.mxu0 %v1610
      %1962 = vmatpush1.bf16.msra.mxu0 %v1609
      %1963 = vmatprep.subr.bf16.mxu0 %v1612
      %1964 = vmatpush1.bf16.msra.mxu0 %v1611
      %1965 = vmatprep.subr.bf16.mxu0 %v1614
      %1966 = vmatpush1.bf16.msra.mxu0 %v1613
      %1967 = vmatprep.subr.bf16.mxu0 %v1616
      %1968 = vmatpush1.bf16.msra.mxu0 %v1615
      %1969 = vmatprep.subr.bf16.mxu0 %v1618
      %1970 = vmatpush1.bf16.msra.mxu0 %v1617
      %1971 = vmatprep.subr.bf16.mxu0 %v1620
      %1972 = vmatpush1.bf16.msra.mxu0 %v1619
      %1973 = vmatprep.subr.bf16.mxu0 %v1622
      %1974 = vmatpush1.bf16.msra.mxu0 %v1621
      %1975 = vmatprep.subr.bf16.mxu0 %v1624
      %1976 = vmatpush1.bf16.msra.mxu0 %v1623
      %1977 = vmatprep.subr.bf16.mxu0 %v1626
      %1978 = vmatpush1.bf16.msra.mxu0 %v1625
      %1979 = vmatprep.subr.bf16.mxu0 %v1628
      %1980 = vmatpush1.bf16.msra.mxu0 %v1627
      %1981 = vmatprep.subr.bf16.mxu0 %v1630
      %1982 = vmatpush1.bf16.msra.mxu0 %v1629
      %1983 = vmatprep.subr.bf16.mxu0 %v1632
      %1984 = vmatpush1.bf16.msra.mxu0 %v1631
      %1985 = vmatprep.subr.bf16.mxu0 %v1634
      %1986 = vmatpush1.bf16.msra.mxu0 %v1633
      %1987 = vmatprep.subr.bf16.mxu0 %v1636
      %1988 = vmatpush1.bf16.msra.mxu0 %v1635
      %1989 = vmatprep.mubr.bf16.mxu0 %v1894
      %1990 = vmatmul.mubr.bf16.gmra.mrb[0].mxu0 %v1893
      %v1991 = vpop.f32.mrb[0].mxu0
      %v1992 = vadd.f32 %v1671, %v1991
      %v1993 = vpop.f32.mrb[0].mxu0
      %v1994 = vadd.f32 %v1671, %v1993
      %v1995 = vpop.f32.mrb[0].mxu0
      %v1996 = vadd.f32 %v1675, %v1995
      %v1997 = vpop.f32.mrb[0].mxu0
      %v1998 = vadd.f32 %v1675, %v1997
      %1999 = vmatprep.mubr.bf16.mxu0 %v1896
      %2000 = vmatmul.mubr.bf16.gmra.mrb[0].mxu0 %v1895
      %v2001 = vpop.f32.mrb[0].mxu0
      %v2002 = vadd.f32 %v1679, %v2001
      %v2003 = vpop.f32.mrb[0].mxu0
      %v2004 = vadd.f32 %v1679, %v2003
      %v2005 = vpop.f32.mrb[0].mxu0
      %v2006 = vadd.f32 %v1683, %v2005
      %v2007 = vpop.f32.mrb[0].mxu0
      %v2008 = vadd.f32 %v1683, %v2007
      %2009 = vmatprep.mubr.bf16.mxu0 %v1898
      %2010 = vmatmul.mubr.bf16.gmra.mrb[0].mxu0 %v1897
      %v2011 = vpop.f32.mrb[0].mxu0
      %v2012 = vadd.f32 %v1687, %v2011
      %v2013 = vpop.f32.mrb[0].mxu0
      %v2014 = vadd.f32 %v1687, %v2013
      %v2015 = vpop.f32.mrb[0].mxu0
      %v2016 = vadd.f32 %v1691, %v2015
      %v2017 = vpop.f32.mrb[0].mxu0
      %v2018 = vadd.f32 %v1691, %v2017
      %2019 = vmatprep.mubr.bf16.mxu0 %v1900
      %2020 = vmatmul.mubr.bf16.gmra.mrb[0].mxu0 %v1899
      %v2021 = vpop.f32.mrb[0].mxu0
      %v2022 = vadd.f32 %v1695, %v2021
      %v2023 = vpop.f32.mrb[0].mxu0
      %v2024 = vadd.f32 %v1695, %v2023
      %v2025 = vpop.f32.mrb[0].mxu0
      %v2026 = vadd.f32 %v1699, %v2025
      %v2027 = vpop.f32.mrb[0].mxu0
      %v2028 = vadd.f32 %v1699, %v2027
      %2029 = vmatprep.mubr.bf16.mxu0 %v1902
      %2030 = vmatmul.mubr.bf16.gmra.mrb[0].mxu0 %v1901
      %v2031 = vpop.f32.mrb[0].mxu0
      %v2032 = vadd.f32 %v1703, %v2031
      %v2033 = vpop.f32.mrb[0].mxu0
      %v2034 = vadd.f32 %v1703, %v2033
      %v2035 = vpop.f32.mrb[0].mxu0
      %v2036 = vadd.f32 %v1707, %v2035
      %v2037 = vpop.f32.mrb[0].mxu0
      %v2038 = vadd.f32 %v1707, %v2037
      %2039 = vmatprep.mubr.bf16.mxu0 %v1904
      %2040 = vmatmul.mubr.bf16.gmra.mrb[0].mxu0 %v1903
      %v2041 = vpop.f32.mrb[0].mxu0
      %v2042 = vadd.f32 %v1711, %v2041
      %v2043 = vpop.f32.mrb[0].mxu0
      %v2044 = vadd.f32 %v1711, %v2043
      %v2045 = vpop.f32.mrb[0].mxu0
      %v2046 = vadd.f32 %v1715, %v2045
      %v2047 = vpop.f32.mrb[0].mxu0
      %v2048 = vadd.f32 %v1715, %v2047
      %2049 = vmatprep.mubr.bf16.mxu0 %v1906
      %2050 = vmatmul.mubr.bf16.gmra.mrb[0].mxu0 %v1905
      %v2051 = vpop.f32.mrb[0].mxu0
      %v2052 = vadd.f32 %v1719, %v2051
      %v2053 = vpop.f32.mrb[0].mxu0
      %v2054 = vadd.f32 %v1719, %v2053
      %v2055 = vpop.f32.mrb[0].mxu0
      %v2056 = vadd.f32 %v1723, %v2055
      %v2057 = vpop.f32.mrb[0].mxu0
      %v2058 = vadd.f32 %v1723, %v2057
      %2059 = vmatprep.mubr.bf16.mxu0 %v1908
      %2060 = vmatmul.mubr.bf16.gmra.mrb[0].mxu0 %v1907
      %v2061 = vpop.f32.mrb[0].mxu0
      %v2062 = vadd.f32 %v1727, %v2061
      %v2063 = vpop.f32.mrb[0].mxu0
      %v2064 = vadd.f32 %v1727, %v2063
      %v2065 = vpop.f32.mrb[0].mxu0
      %v2066 = vadd.f32 %v1731, %v2065
      %v2067 = vpop.f32.mrb[0].mxu0
      %v2068 = vadd.f32 %v1731, %v2067
      %2069 = vmatprep.mubr.bf16.mxu0 %v1910
      %2070 = vmatmul.mubr.bf16.gmra.mrb[0].mxu0 %v1909
      %v2071 = vpop.f32.mrb[0].mxu0
      %v2072 = vadd.f32 %v1735, %v2071
      %v2073 = vpop.f32.mrb[0].mxu0
      %v2074 = vadd.f32 %v1735, %v2073
      %v2075 = vpop.f32.mrb[0].mxu0
      %v2076 = vadd.f32 %v1739, %v2075
      %v2077 = vpop.f32.mrb[0].mxu0
      %v2078 = vadd.f32 %v1739, %v2077
      %2079 = vmatprep.mubr.bf16.mxu0 %v1912
      %2080 = vmatmul.mubr.bf16.gmra.mrb[0].mxu0 %v1911
      %v2081 = vpop.f32.mrb[0].mxu0
      %v2082 = vadd.f32 %v1743, %v2081
      %v2083 = vpop.f32.mrb[0].mxu0
      %v2084 = vadd.f32 %v1743, %v2083
      %v2085 = vpop.f32.mrb[0].mxu0
      %v2086 = vadd.f32 %v1747, %v2085
      %v2087 = vpop.f32.mrb[0].mxu0
      %v2088 = vadd.f32 %v1747, %v2087
      %2089 = vmatprep.mubr.bf16.mxu0 %v1914
      %2090 = vmatmul.mubr.bf16.gmra.mrb[0].mxu0 %v1913
      %v2091 = vpop.f32.mrb[0].mxu0
      %v2092 = vadd.f32 %v1751, %v2091
      %v2093 = vpop.f32.mrb[0].mxu0
      %v2094 = vadd.f32 %v1751, %v2093
      %v2095 = vpop.f32.mrb[0].mxu0
      %v2096 = vadd.f32 %v1755, %v2095
      %v2097 = vpop.f32.mrb[0].mxu0
      %v2098 = vadd.f32 %v1755, %v2097
      %2099 = vmatprep.mubr.bf16.mxu0 %v1916
      %2100 = vmatmul.mubr.bf16.gmra.mrb[0].mxu0 %v1915
      %v2101 = vpop.f32.mrb[0].mxu0
      %v2102 = vadd.f32 %v1759, %v2101
      %v2103 = vpop.f32.mrb[0].mxu0
      %v2104 = vadd.f32 %v1759, %v2103
      %v2105 = vpop.f32.mrb[0].mxu0
      %v2106 = vadd.f32 %v1763, %v2105
      %v2107 = vpop.f32.mrb[0].mxu0
      %v2108 = vadd.f32 %v1763, %v2107
      %2109 = vmatprep.mubr.bf16.mxu0 %v1918
      %2110 = vmatmul.mubr.bf16.gmra.mrb[0].mxu0 %v1917
      %v2111 = vpop.f32.mrb[0].mxu0
      %v2112 = vadd.f32 %v1767, %v2111
      %v2113 = vpop.f32.mrb[0].mxu0
      %v2114 = vadd.f32 %v1767, %v2113
      %v2115 = vpop.f32.mrb[0].mxu0
      %v2116 = vadd.f32 %v1771, %v2115
      %v2117 = vpop.f32.mrb[0].mxu0
      %v2118 = vadd.f32 %v1771, %v2117
      %2119 = vmatprep.mubr.bf16.mxu0 %v1920
      %2120 = vmatmul.mubr.bf16.gmra.mrb[0].mxu0 %v1919
      %v2121 = vpop.f32.mrb[0].mxu0
      %v2122 = vadd.f32 %v1775, %v2121
      %v2123 = vpop.f32.mrb[0].mxu0
      %v2124 = vadd.f32 %v1775, %v2123
      %v2125 = vpop.f32.mrb[0].mxu0
      %v2126 = vadd.f32 %v1779, %v2125
      %v2127 = vpop.f32.mrb[0].mxu0
      %v2128 = vadd.f32 %v1779, %v2127
      %2129 = vmatprep.mubr.bf16.mxu0 %v1922
      %2130 = vmatmul.mubr.bf16.gmra.mrb[0].mxu0 %v1921
      %v2131 = vpop.f32.mrb[0].mxu0
      %v2132 = vadd.f32 %v1783, %v2131
      %v2133 = vpop.f32.mrb[0].mxu0
      %v2134 = vadd.f32 %v1783, %v2133
      %v2135 = vpop.f32.mrb[0].mxu0
      %v2136 = vadd.f32 %v1787, %v2135
      %v2137 = vpop.f32.mrb[0].mxu0
      %v2138 = vadd.f32 %v1787, %v2137
      %2139 = vmatprep.mubr.bf16.mxu0 %v1924
      %2140 = vmatmul.mubr.bf16.gmra.mrb[0].mxu0 %v1923
      %v2141 = vpop.f32.mrb[0].mxu0
      %v2142 = vadd.f32 %v1791, %v2141
      %v2143 = vpop.f32.mrb[0].mxu0
      %v2144 = vadd.f32 %v1791, %v2143
      %v2145 = vpop.f32.mrb[0].mxu0
      %v2146 = vadd.f32 %v1795, %v2145
      %v2147 = vpop.f32.mrb[0].mxu0
      %v2148 = vadd.f32 %v1795, %v2147
      %2149 = vdwg.mxu0
      %v2150 = vpack.c.bf16 %v1996, %v1992
      %v2151 = vpack.c.bf16 %v1998, %v1994
      %v2152 = vpack.c.bf16 %v2006, %v2002
      %v2153 = vpack.c.bf16 %v2008, %v2004
      %v2154 = vpack.c.bf16 %v2016, %v2012
      %v2155 = vpack.c.bf16 %v2018, %v2014
      %v2156 = vpack.c.bf16 %v2026, %v2022
      %v2157 = vpack.c.bf16 %v2028, %v2024
      %v2158 = vpack.c.bf16 %v2036, %v2032
      %v2159 = vpack.c.bf16 %v2038, %v2034
      %v2160 = vpack.c.bf16 %v2046, %v2042
      %v2161 = vpack.c.bf16 %v2048, %v2044
      %v2162 = vpack.c.bf16 %v2056, %v2052
      %v2163 = vpack.c.bf16 %v2058, %v2054
      %v2164 = vpack.c.bf16 %v2066, %v2062
      %v2165 = vpack.c.bf16 %v2068, %v2064
      %v2166 = vpack.c.bf16 %v2076, %v2072
      %v2167 = vpack.c.bf16 %v2078, %v2074
      %v2168 = vpack.c.bf16 %v2086, %v2082
      %v2169 = vpack.c.bf16 %v2088, %v2084
      %v2170 = vpack.c.bf16 %v2096, %v2092
      %v2171 = vpack.c.bf16 %v2098, %v2094
      %v2172 = vpack.c.bf16 %v2106, %v2102
      %v2173 = vpack.c.bf16 %v2108, %v2104
      %v2174 = vpack.c.bf16 %v2116, %v2112
      %v2175 = vpack.c.bf16 %v2118, %v2114
      %v2176 = vpack.c.bf16 %v2126, %v2122
      %v2177 = vpack.c.bf16 %v2128, %v2124
      %v2178 = vpack.c.bf16 %v2136, %v2132
      %v2179 = vpack.c.bf16 %v2138, %v2134
      %v2180 = vpack.c.bf16 %v2146, %v2142
      %v2181 = vpack.c.bf16 %v2148, %v2144
      %v2182 = vmax.bf16 %v2150, 0
      %v2183 = vmax.bf16 %v2151, 0
      %v2184 = vmax.bf16 %v2152, 0
      %v2185 = vmax.bf16 %v2153, 0
      %v2186 = vmax.bf16 %v2154, 0
      %v2187 = vmax.bf16 %v2155, 0
      %v2188 = vmax.bf16 %v2156, 0
      %v2189 = vmax.bf16 %v2157, 0
      %v2190 = vmax.bf16 %v2158, 0
      %v2191 = vmax.bf16 %v2159, 0
      %v2192 = vmax.bf16 %v2160, 0
      %v2193 = vmax.bf16 %v2161, 0
      %v2194 = vmax.bf16 %v2162, 0
      %v2195 = vmax.bf16 %v2163, 0
      %v2196 = vmax.bf16 %v2164, 0
      %v2197 = vmax.bf16 %v2165, 0
      %v2198 = vmax.bf16 %v2166, 0
      %v2199 = vmax.bf16 %v2167, 0
      %v2200 = vmax.bf16 %v2168, 0
      %v2201 = vmax.bf16 %v2169, 0
      %v2202 = vmax.bf16 %v2170, 0
      %v2203 = vmax.bf16 %v2171, 0
      %v2204 = vmax.bf16 %v2172, 0
      %v2205 = vmax.bf16 %v2173, 0
      %v2206 = vmax.bf16 %v2174, 0
      %v2207 = vmax.bf16 %v2175, 0
      %v2208 = vmax.bf16 %v2176, 0
      %v2209 = vmax.bf16 %v2177, 0
      %v2210 = vmax.bf16 %v2178, 0
      %v2211 = vmax.bf16 %v2179, 0
      %v2212 = vmax.bf16 %v2180, 0
      %v2213 = vmax.bf16 %v2181, 0
      %v2214 = vld [vmem:[%s5] sm:$0xff]
      %v2215 = vld [vmem:[%s5 + $0x8] sm:$0xff]
      %v2216 = vld [vmem:[%s5 + $0x10] sm:$0xff]
      %v2217 = vld [vmem:[%s5 + $0x18] sm:$0xff]
      %v2218 = vld [vmem:[%s5 + $0x20] sm:$0xff]
      %v2219 = vld [vmem:[%s5 + $0x28] sm:$0xff]
      %v2220 = vld [vmem:[%s5 + $0x30] sm:$0xff]
      %v2221 = vld [vmem:[%s5 + $0x38] sm:$0xff]
      %v2222 = vld [vmem:[%s5 + $0x40] sm:$0xff]
      %v2223 = vld [vmem:[%s5 + $0x48] sm:$0xff]
      %v2224 = vld [vmem:[%s5 + $0x50] sm:$0xff]
      %v2225 = vld [vmem:[%s5 + $0x58] sm:$0xff]
      %v2226 = vld [vmem:[%s5 + $0x60] sm:$0xff]
      %v2227 = vld [vmem:[%s5 + $0x68] sm:$0xff]
      %v2228 = vld [vmem:[%s5 + $0x70] sm:$0xff]
      %v2229 = vld [vmem:[%s5 + $0x78] sm:$0xff]
      %v2230 = vld [vmem:[%s5 + $0x80] sm:$0xff]
      %v2231 = vld [vmem:[%s5 + $0x88] sm:$0xff]
      %v2232 = vld [vmem:[%s5 + $0x90] sm:$0xff]
      %v2233 = vld [vmem:[%s5 + $0x98] sm:$0xff]
      %v2234 = vld [vmem:[%s5 + $0xa0] sm:$0xff]
      %v2235 = vld [vmem:[%s5 + $0xa8] sm:$0xff]
      %v2236 = vld [vmem:[%s5 + $0xb0] sm:$0xff]
      %v2237 = vld [vmem:[%s5 + $0xb8] sm:$0xff]
      %v2238 = vld [vmem:[%s5 + $0xc0] sm:$0xff]
      %v2239 = vld [vmem:[%s5 + $0xc8] sm:$0xff]
      %v2240 = vld [vmem:[%s5 + $0xd0] sm:$0xff]
      %v2241 = vld [vmem:[%s5 + $0xd8] sm:$0xff]
      %v2242 = vld [vmem:[%s5 + $0xe0] sm:$0xff]
      %v2243 = vld [vmem:[%s5 + $0xe8] sm:$0xff]
      %v2244 = vld [vmem:[%s5 + $0xf0] sm:$0xff]
      %v2245 = vld [vmem:[%s5 + $0xf8] sm:$0xff]
      %2246 = vset.pattern.permute.xlu0 3
      %2247 = vperm.xlu0 %2246, %v337
      %v2248 = vpop.permute.xlu0 %2247
      %2250 = vset.pattern.permute.xlu0 3
      %2251 = vperm.xlu0 %2250, %v338
      %v2252 = vpop.permute.xlu0 %2251
      %2254 = vset.pattern.permute.xlu0 3
      %2255 = vperm.xlu0 %2254, %v339
      %v2256 = vpop.permute.xlu0 %2255
      %2258 = vset.pattern.permute.xlu0 3
      %2259 = vperm.xlu0 %2258, %v340
      %v2260 = vpop.permute.xlu0 %2259
      %2262 = vset.pattern.permute.xlu0 3
      %2263 = vperm.xlu0 %2262, %v341
      %v2264 = vpop.permute.xlu0 %2263
      %2266 = vset.pattern.permute.xlu0 3
      %2267 = vperm.xlu0 %2266, %v342
      %v2268 = vpop.permute.xlu0 %2267
      %2270 = vset.pattern.permute.xlu0 3
      %2271 = vperm.xlu0 %2270, %v343
      %v2272 = vpop.permute.xlu0 %2271
      %2274 = vset.pattern.permute.xlu0 3
      %2275 = vperm.xlu0 %2274, %v344
      %v2276 = vpop.permute.xlu0 %2275
      %2278 = vset.pattern.permute.xlu0 3
      %2279 = vperm.xlu0 %2278, %v345
      %v2280 = vpop.permute.xlu0 %2279
      %2282 = vset.pattern.permute.xlu0 3
      %2283 = vperm.xlu0 %2282, %v346
      %v2284 = vpop.permute.xlu0 %2283
      %2286 = vset.pattern.permute.xlu0 3
      %2287 = vperm.xlu0 %2286, %v347
      %v2288 = vpop.permute.xlu0 %2287
      %2290 = vset.pattern.permute.xlu0 3
      %2291 = vperm.xlu0 %2290, %v348
      %v2292 = vpop.permute.xlu0 %2291
      %2294 = vset.pattern.permute.xlu0 3
      %2295 = vperm.xlu0 %2294, %v349
      %v2296 = vpop.permute.xlu0 %2295
      %2298 = vset.pattern.permute.xlu0 3
      %2299 = vperm.xlu0 %2298, %v350
      %v2300 = vpop.permute.xlu0 %2299
      %2302 = vset.pattern.permute.xlu0 3
      %2303 = vperm.xlu0 %2302, %v351
      %v2304 = vpop.permute.xlu0 %2303
      %2306 = vset.pattern.permute.xlu0 3
      %2307 = vperm.xlu0 %2306, %v352
      %v2308 = vpop.permute.xlu0 %2307
      %2310 = vset.pattern.permute.xlu0 3
      %2311 = vperm.xlu0 %2310, %v353
      %v2312 = vpop.permute.xlu0 %2311
      %2314 = vset.pattern.permute.xlu0 3
      %2315 = vperm.xlu0 %2314, %v354
      %v2316 = vpop.permute.xlu0 %2315
      %2318 = vset.pattern.permute.xlu0 3
      %2319 = vperm.xlu0 %2318, %v355
      %v2320 = vpop.permute.xlu0 %2319
      %2322 = vset.pattern.permute.xlu0 3
      %2323 = vperm.xlu0 %2322, %v356
      %v2324 = vpop.permute.xlu0 %2323
      %2326 = vset.pattern.permute.xlu0 3
      %2327 = vperm.xlu0 %2326, %v357
      %v2328 = vpop.permute.xlu0 %2327
      %2330 = vset.pattern.permute.xlu0 3
      %2331 = vperm.xlu0 %2330, %v358
      %v2332 = vpop.permute.xlu0 %2331
      %2334 = vset.pattern.permute.xlu0 3
      %2335 = vperm.xlu0 %2334, %v359
      %v2336 = vpop.permute.xlu0 %2335
      %2338 = vset.pattern.permute.xlu0 3
      %2339 = vperm.xlu0 %2338, %v360
      %v2340 = vpop.permute.xlu0 %2339
      %2342 = vset.pattern.permute.xlu0 3
      %2343 = vperm.xlu0 %2342, %v361
      %v2344 = vpop.permute.xlu0 %2343
      %2346 = vset.pattern.permute.xlu0 3
      %2347 = vperm.xlu0 %2346, %v362
      %v2348 = vpop.permute.xlu0 %2347
      %2350 = vset.pattern.permute.xlu0 3
      %2351 = vperm.xlu0 %2350, %v363
      %v2352 = vpop.permute.xlu0 %2351
      %2354 = vset.pattern.permute.xlu0 3
      %2355 = vperm.xlu0 %2354, %v364
      %v2356 = vpop.permute.xlu0 %2355
      %2358 = vset.pattern.permute.xlu0 3
      %2359 = vperm.xlu0 %2358, %v365
      %v2360 = vpop.permute.xlu0 %2359
      %2362 = vset.pattern.permute.xlu0 3
      %2363 = vperm.xlu0 %2362, %v366
      %v2364 = vpop.permute.xlu0 %2363
      %2366 = vset.pattern.permute.xlu0 3
      %2367 = vperm.xlu0 %2366, %v367
      %v2368 = vpop.permute.xlu0 %2367
      %2370 = vset.pattern.permute.xlu0 3
      %2371 = vperm.xlu0 %2370, %v368
      %v2372 = vpop.permute.xlu0 %2371
      %v2406 = vunpack.c.l.b16 %v2214
      %v2407 = vunpack.c.h.b16 %v2214
      %v2408 = vunpack.c.l.b16 %v2215
      %v2409 = vunpack.c.h.b16 %v2215
      %v2410 = vunpack.c.l.b16 %v2216
      %v2411 = vunpack.c.h.b16 %v2216
      %v2412 = vunpack.c.l.b16 %v2217
      %v2413 = vunpack.c.h.b16 %v2217
      %v2414 = vunpack.c.l.b16 %v2218
      %v2415 = vunpack.c.h.b16 %v2218
      %v2416 = vunpack.c.l.b16 %v2219
      %v2417 = vunpack.c.h.b16 %v2219
      %v2418 = vunpack.c.l.b16 %v2220
      %v2419 = vunpack.c.h.b16 %v2220
      %v2420 = vunpack.c.l.b16 %v2221
      %v2421 = vunpack.c.h.b16 %v2221
      %v2422 = vunpack.c.l.b16 %v2222
      %v2423 = vunpack.c.h.b16 %v2222
      %v2424 = vunpack.c.l.b16 %v2223
      %v2425 = vunpack.c.h.b16 %v2223
      %v2426 = vunpack.c.l.b16 %v2224
      %v2427 = vunpack.c.h.b16 %v2224
      %v2428 = vunpack.c.l.b16 %v2225
      %v2429 = vunpack.c.h.b16 %v2225
      %v2430 = vunpack.c.l.b16 %v2226
      %v2431 = vunpack.c.h.b16 %v2226
      %v2432 = vunpack.c.l.b16 %v2227
      %v2433 = vunpack.c.h.b16 %v2227
      %v2434 = vunpack.c.l.b16 %v2228
      %v2435 = vunpack.c.h.b16 %v2228
      %v2436 = vunpack.c.l.b16 %v2229
      %v2437 = vunpack.c.h.b16 %v2229
      %v2438 = vunpack.c.l.b16 %v2230
      %v2439 = vunpack.c.h.b16 %v2230
      %v2440 = vunpack.c.l.b16 %v2231
      %v2441 = vunpack.c.h.b16 %v2231
      %v2442 = vunpack.c.l.b16 %v2232
      %v2443 = vunpack.c.h.b16 %v2232
      %v2444 = vunpack.c.l.b16 %v2233
      %v2445 = vunpack.c.h.b16 %v2233
      %v2446 = vunpack.c.l.b16 %v2234
      %v2447 = vunpack.c.h.b16 %v2234
      %v2448 = vunpack.c.l.b16 %v2235
      %v2449 = vunpack.c.h.b16 %v2235
      %v2450 = vunpack.c.l.b16 %v2236
      %v2451 = vunpack.c.h.b16 %v2236
      %v2452 = vunpack.c.l.b16 %v2237
      %v2453 = vunpack.c.h.b16 %v2237
      %v2454 = vunpack.c.l.b16 %v2238
      %v2455 = vunpack.c.h.b16 %v2238
      %v2456 = vunpack.c.l.b16 %v2239
      %v2457 = vunpack.c.h.b16 %v2239
      %v2458 = vunpack.c.l.b16 %v2240
      %v2459 = vunpack.c.h.b16 %v2240
      %v2460 = vunpack.c.l.b16 %v2241
      %v2461 = vunpack.c.h.b16 %v2241
      %v2462 = vunpack.c.l.b16 %v2242
      %v2463 = vunpack.c.h.b16 %v2242
      %v2464 = vunpack.c.l.b16 %v2243
      %v2465 = vunpack.c.h.b16 %v2243
      %v2466 = vunpack.c.l.b16 %v2244
      %v2467 = vunpack.c.h.b16 %v2244
      %v2468 = vunpack.c.l.b16 %v2245
      %v2469 = vunpack.c.h.b16 %v2245
      %v2470 = vpack.c.b16 %v2408, %v2406
      %v2471 = vpack.c.b16 %v2409, %v2407
      %v2472 = vpack.c.b16 %v2412, %v2410
      %v2473 = vpack.c.b16 %v2413, %v2411
      %v2474 = vpack.c.b16 %v2416, %v2414
      %v2475 = vpack.c.b16 %v2417, %v2415
      %v2476 = vpack.c.b16 %v2420, %v2418
      %v2477 = vpack.c.b16 %v2421, %v2419
      %v2478 = vpack.c.b16 %v2424, %v2422
      %v2479 = vpack.c.b16 %v2425, %v2423
      %v2480 = vpack.c.b16 %v2428, %v2426
      %v2481 = vpack.c.b16 %v2429, %v2427
      %v2482 = vpack.c.b16 %v2432, %v2430
      %v2483 = vpack.c.b16 %v2433, %v2431
      %v2484 = vpack.c.b16 %v2436, %v2434
      %v2485 = vpack.c.b16 %v2437, %v2435
      %v2486 = vpack.c.b16 %v2440, %v2438
      %v2487 = vpack.c.b16 %v2441, %v2439
      %v2488 = vpack.c.b16 %v2444, %v2442
      %v2489 = vpack.c.b16 %v2445, %v2443
      %v2490 = vpack.c.b16 %v2448, %v2446
      %v2491 = vpack.c.b16 %v2449, %v2447
      %v2492 = vpack.c.b16 %v2452, %v2450
      %v2493 = vpack.c.b16 %v2453, %v2451
      %v2494 = vpack.c.b16 %v2456, %v2454
      %v2495 = vpack.c.b16 %v2457, %v2455
      %v2496 = vpack.c.b16 %v2460, %v2458
      %v2497 = vpack.c.b16 %v2461, %v2459
      %v2498 = vpack.c.b16 %v2464, %v2462
      %v2499 = vpack.c.b16 %v2465, %v2463
      %v2500 = vpack.c.b16 %v2468, %v2466
      %v2501 = vpack.c.b16 %v2469, %v2467
      %2534 = vmatprep.subr.bf16.mxu0 %v2183
      %2535 = vmatpush1.bf16.msra.mxu0 %v2182
      %2536 = vmatprep.subr.bf16.mxu0 %v2185
      %2537 = vmatpush1.bf16.msra.mxu0 %v2184
      %2538 = vmatprep.subr.bf16.mxu0 %v2187
      %2539 = vmatpush1.bf16.msra.mxu0 %v2186
      %2540 = vmatprep.subr.bf16.mxu0 %v2189
      %2541 = vmatpush1.bf16.msra.mxu0 %v2188
      %2542 = vmatprep.subr.bf16.mxu0 %v2191
      %2543 = vmatpush1.bf16.msra.mxu0 %v2190
      %2544 = vmatprep.subr.bf16.mxu0 %v2193
      %2545 = vmatpush1.bf16.msra.mxu0 %v2192
      %2546 = vmatprep.subr.bf16.mxu0 %v2195
      %2547 = vmatpush1.bf16.msra.mxu0 %v2194
      %2548 = vmatprep.subr.bf16.mxu0 %v2197
      %2549 = vmatpush1.bf16.msra.mxu0 %v2196
      %2550 = vmatprep.subr.bf16.mxu0 %v2199
      %2551 = vmatpush1.bf16.msra.mxu0 %v2198
      %2552 = vmatprep.subr.bf16.mxu0 %v2201
      %2553 = vmatpush1.bf16.msra.mxu0 %v2200
      %2554 = vmatprep.subr.bf16.mxu0 %v2203
      %2555 = vmatpush1.bf16.msra.mxu0 %v2202
      %2556 = vmatprep.subr.bf16.mxu0 %v2205
      %2557 = vmatpush1.bf16.msra.mxu0 %v2204
      %2558 = vmatprep.subr.bf16.mxu0 %v2207
      %2559 = vmatpush1.bf16.msra.mxu0 %v2206
      %2560 = vmatprep.subr.bf16.mxu0 %v2209
      %2561 = vmatpush1.bf16.msra.mxu0 %v2208
      %2562 = vmatprep.subr.bf16.mxu0 %v2211
      %2563 = vmatpush1.bf16.msra.mxu0 %v2210
      %2564 = vmatprep.subr.bf16.mxu0 %v2213
      %2565 = vmatpush1.bf16.msra.mxu0 %v2212
      %2566 = vmatprep.mubr.bf16.mxu0 %v2471
      %2567 = vmatmul.mubr.bf16.gmra.mrb[0].mxu0 %v2470
      %v2568 = vpop.f32.mrb[0].mxu0
      %v2569 = vadd.f32 %v2248, %v2568
      %v2570 = vpop.f32.mrb[0].mxu0
      %v2571 = vadd.f32 %v2248, %v2570
      %v2572 = vpop.f32.mrb[0].mxu0
      %v2573 = vadd.f32 %v2252, %v2572
      %v2574 = vpop.f32.mrb[0].mxu0
      %v2575 = vadd.f32 %v2252, %v2574
      %2576 = vmatprep.mubr.bf16.mxu0 %v2473
      %2577 = vmatmul.mubr.bf16.gmra.mrb[0].mxu0 %v2472
      %v2578 = vpop.f32.mrb[0].mxu0
      %v2579 = vadd.f32 %v2256, %v2578
      %v2580 = vpop.f32.mrb[0].mxu0
      %v2581 = vadd.f32 %v2256, %v2580
      %v2582 = vpop.f32.mrb[0].mxu0
      %v2583 = vadd.f32 %v2260, %v2582
      %v2584 = vpop.f32.mrb[0].mxu0
      %v2585 = vadd.f32 %v2260, %v2584
      %2586 = vmatprep.mubr.bf16.mxu0 %v2475
      %2587 = vmatmul.mubr.bf16.gmra.mrb[0].mxu0 %v2474
      %v2588 = vpop.f32.mrb[0].mxu0
      %v2589 = vadd.f32 %v2264, %v2588
      %v2590 = vpop.f32.mrb[0].mxu0
      %v2591 = vadd.f32 %v2264, %v2590
      %v2592 = vpop.f32.mrb[0].mxu0
      %v2593 = vadd.f32 %v2268, %v2592
      %v2594 = vpop.f32.mrb[0].mxu0
      %v2595 = vadd.f32 %v2268, %v2594
      %2596 = vmatprep.mubr.bf16.mxu0 %v2477
      %2597 = vmatmul.mubr.bf16.gmra.mrb[0].mxu0 %v2476
      %v2598 = vpop.f32.mrb[0].mxu0
      %v2599 = vadd.f32 %v2272, %v2598
      %v2600 = vpop.f32.mrb[0].mxu0
      %v2601 = vadd.f32 %v2272, %v2600
      %v2602 = vpop.f32.mrb[0].mxu0
      %v2603 = vadd.f32 %v2276, %v2602
      %v2604 = vpop.f32.mrb[0].mxu0
      %v2605 = vadd.f32 %v2276, %v2604
      %2606 = vmatprep.mubr.bf16.mxu0 %v2479
      %2607 = vmatmul.mubr.bf16.gmra.mrb[0].mxu0 %v2478
      %v2608 = vpop.f32.mrb[0].mxu0
      %v2609 = vadd.f32 %v2280, %v2608
      %v2610 = vpop.f32.mrb[0].mxu0
      %v2611 = vadd.f32 %v2280, %v2610
      %v2612 = vpop.f32.mrb[0].mxu0
      %v2613 = vadd.f32 %v2284, %v2612
      %v2614 = vpop.f32.mrb[0].mxu0
      %v2615 = vadd.f32 %v2284, %v2614
      %2616 = vmatprep.mubr.bf16.mxu0 %v2481
      %2617 = vmatmul.mubr.bf16.gmra.mrb[0].mxu0 %v2480
      %v2618 = vpop.f32.mrb[0].mxu0
      %v2619 = vadd.f32 %v2288, %v2618
      %v2620 = vpop.f32.mrb[0].mxu0
      %v2621 = vadd.f32 %v2288, %v2620
      %v2622 = vpop.f32.mrb[0].mxu0
      %v2623 = vadd.f32 %v2292, %v2622
      %v2624 = vpop.f32.mrb[0].mxu0
      %v2625 = vadd.f32 %v2292, %v2624
      %2626 = vmatprep.mubr.bf16.mxu0 %v2483
      %2627 = vmatmul.mubr.bf16.gmra.mrb[0].mxu0 %v2482
      %v2628 = vpop.f32.mrb[0].mxu0
      %v2629 = vadd.f32 %v2296, %v2628
      %v2630 = vpop.f32.mrb[0].mxu0
      %v2631 = vadd.f32 %v2296, %v2630
      %v2632 = vpop.f32.mrb[0].mxu0
      %v2633 = vadd.f32 %v2300, %v2632
      %v2634 = vpop.f32.mrb[0].mxu0
      %v2635 = vadd.f32 %v2300, %v2634
      %2636 = vmatprep.mubr.bf16.mxu0 %v2485
      %2637 = vmatmul.mubr.bf16.gmra.mrb[0].mxu0 %v2484
      %v2638 = vpop.f32.mrb[0].mxu0
      %v2639 = vadd.f32 %v2304, %v2638
      %v2640 = vpop.f32.mrb[0].mxu0
      %v2641 = vadd.f32 %v2304, %v2640
      %v2642 = vpop.f32.mrb[0].mxu0
      %v2643 = vadd.f32 %v2308, %v2642
      %v2644 = vpop.f32.mrb[0].mxu0
      %v2645 = vadd.f32 %v2308, %v2644
      %2646 = vmatprep.mubr.bf16.mxu0 %v2487
      %2647 = vmatmul.mubr.bf16.gmra.mrb[0].mxu0 %v2486
      %v2648 = vpop.f32.mrb[0].mxu0
      %v2649 = vadd.f32 %v2312, %v2648
      %v2650 = vpop.f32.mrb[0].mxu0
      %v2651 = vadd.f32 %v2312, %v2650
      %v2652 = vpop.f32.mrb[0].mxu0
      %v2653 = vadd.f32 %v2316, %v2652
      %v2654 = vpop.f32.mrb[0].mxu0
      %v2655 = vadd.f32 %v2316, %v2654
      %2656 = vmatprep.mubr.bf16.mxu0 %v2489
      %2657 = vmatmul.mubr.bf16.gmra.mrb[0].mxu0 %v2488
      %v2658 = vpop.f32.mrb[0].mxu0
      %v2659 = vadd.f32 %v2320, %v2658
      %v2660 = vpop.f32.mrb[0].mxu0
      %v2661 = vadd.f32 %v2320, %v2660
      %v2662 = vpop.f32.mrb[0].mxu0
      %v2663 = vadd.f32 %v2324, %v2662
      %v2664 = vpop.f32.mrb[0].mxu0
      %v2665 = vadd.f32 %v2324, %v2664
      %2666 = vmatprep.mubr.bf16.mxu0 %v2491
      %2667 = vmatmul.mubr.bf16.gmra.mrb[0].mxu0 %v2490
      %v2668 = vpop.f32.mrb[0].mxu0
      %v2669 = vadd.f32 %v2328, %v2668
      %v2670 = vpop.f32.mrb[0].mxu0
      %v2671 = vadd.f32 %v2328, %v2670
      %v2672 = vpop.f32.mrb[0].mxu0
      %v2673 = vadd.f32 %v2332, %v2672
      %v2674 = vpop.f32.mrb[0].mxu0
      %v2675 = vadd.f32 %v2332, %v2674
      %2676 = vmatprep.mubr.bf16.mxu0 %v2493
      %2677 = vmatmul.mubr.bf16.gmra.mrb[0].mxu0 %v2492
      %v2678 = vpop.f32.mrb[0].mxu0
      %v2679 = vadd.f32 %v2336, %v2678
      %v2680 = vpop.f32.mrb[0].mxu0
      %v2681 = vadd.f32 %v2336, %v2680
      %v2682 = vpop.f32.mrb[0].mxu0
      %v2683 = vadd.f32 %v2340, %v2682
      %v2684 = vpop.f32.mrb[0].mxu0
      %v2685 = vadd.f32 %v2340, %v2684
      %2686 = vmatprep.mubr.bf16.mxu0 %v2495
      %2687 = vmatmul.mubr.bf16.gmra.mrb[0].mxu0 %v2494
      %v2688 = vpop.f32.mrb[0].mxu0
      %v2689 = vadd.f32 %v2344, %v2688
      %v2690 = vpop.f32.mrb[0].mxu0
      %v2691 = vadd.f32 %v2344, %v2690
      %v2692 = vpop.f32.mrb[0].mxu0
      %v2693 = vadd.f32 %v2348, %v2692
      %v2694 = vpop.f32.mrb[0].mxu0
      %v2695 = vadd.f32 %v2348, %v2694
      %2696 = vmatprep.mubr.bf16.mxu0 %v2497
      %2697 = vmatmul.mubr.bf16.gmra.mrb[0].mxu0 %v2496
      %v2698 = vpop.f32.mrb[0].mxu0
      %v2699 = vadd.f32 %v2352, %v2698
      %v2700 = vpop.f32.mrb[0].mxu0
      %v2701 = vadd.f32 %v2352, %v2700
      %v2702 = vpop.f32.mrb[0].mxu0
      %v2703 = vadd.f32 %v2356, %v2702
      %v2704 = vpop.f32.mrb[0].mxu0
      %v2705 = vadd.f32 %v2356, %v2704
      %2706 = vmatprep.mubr.bf16.mxu0 %v2499
      %2707 = vmatmul.mubr.bf16.gmra.mrb[0].mxu0 %v2498
      %v2708 = vpop.f32.mrb[0].mxu0
      %v2709 = vadd.f32 %v2360, %v2708
      %v2710 = vpop.f32.mrb[0].mxu0
      %v2711 = vadd.f32 %v2360, %v2710
      %v2712 = vpop.f32.mrb[0].mxu0
      %v2713 = vadd.f32 %v2364, %v2712
      %v2714 = vpop.f32.mrb[0].mxu0
      %v2715 = vadd.f32 %v2364, %v2714
      %2716 = vmatprep.mubr.bf16.mxu0 %v2501
      %2717 = vmatmul.mubr.bf16.gmra.mrb[0].mxu0 %v2500
      %v2718 = vpop.f32.mrb[0].mxu0
      %v2719 = vadd.f32 %v2368, %v2718
      %v2720 = vpop.f32.mrb[0].mxu0
      %v2721 = vadd.f32 %v2368, %v2720
      %v2722 = vpop.f32.mrb[0].mxu0
      %v2723 = vadd.f32 %v2372, %v2722
      %v2724 = vpop.f32.mrb[0].mxu0
      %v2725 = vadd.f32 %v2372, %v2724
      %2726 = vdwg.mxu0
      %v2727 = vpack.c.bf16 %v2573, %v2569
      %v2728 = vpack.c.bf16 %v2575, %v2571
      %v2729 = vpack.c.bf16 %v2583, %v2579
      %v2730 = vpack.c.bf16 %v2585, %v2581
      %v2731 = vpack.c.bf16 %v2593, %v2589
      %v2732 = vpack.c.bf16 %v2595, %v2591
      %v2733 = vpack.c.bf16 %v2603, %v2599
      %v2734 = vpack.c.bf16 %v2605, %v2601
      %v2735 = vpack.c.bf16 %v2613, %v2609
      %v2736 = vpack.c.bf16 %v2615, %v2611
      %v2737 = vpack.c.bf16 %v2623, %v2619
      %v2738 = vpack.c.bf16 %v2625, %v2621
      %v2739 = vpack.c.bf16 %v2633, %v2629
      %v2740 = vpack.c.bf16 %v2635, %v2631
      %v2741 = vpack.c.bf16 %v2643, %v2639
      %v2742 = vpack.c.bf16 %v2645, %v2641
      %v2743 = vpack.c.bf16 %v2653, %v2649
      %v2744 = vpack.c.bf16 %v2655, %v2651
      %v2745 = vpack.c.bf16 %v2663, %v2659
      %v2746 = vpack.c.bf16 %v2665, %v2661
      %v2747 = vpack.c.bf16 %v2673, %v2669
      %v2748 = vpack.c.bf16 %v2675, %v2671
      %v2749 = vpack.c.bf16 %v2683, %v2679
      %v2750 = vpack.c.bf16 %v2685, %v2681
      %v2751 = vpack.c.bf16 %v2693, %v2689
      %v2752 = vpack.c.bf16 %v2695, %v2691
      %v2753 = vpack.c.bf16 %v2703, %v2699
      %v2754 = vpack.c.bf16 %v2705, %v2701
      %v2755 = vpack.c.bf16 %v2713, %v2709
      %v2756 = vpack.c.bf16 %v2715, %v2711
      %v2757 = vpack.c.bf16 %v2723, %v2719
      %v2758 = vpack.c.bf16 %v2725, %v2721
      %v2759 = vmax.bf16 %v2727, 0
      %v2760 = vmax.bf16 %v2728, 0
      %v2761 = vmax.bf16 %v2729, 0
      %v2762 = vmax.bf16 %v2730, 0
      %v2763 = vmax.bf16 %v2731, 0
      %v2764 = vmax.bf16 %v2732, 0
      %v2765 = vmax.bf16 %v2733, 0
      %v2766 = vmax.bf16 %v2734, 0
      %v2767 = vmax.bf16 %v2735, 0
      %v2768 = vmax.bf16 %v2736, 0
      %v2769 = vmax.bf16 %v2737, 0
      %v2770 = vmax.bf16 %v2738, 0
      %v2771 = vmax.bf16 %v2739, 0
      %v2772 = vmax.bf16 %v2740, 0
      %v2773 = vmax.bf16 %v2741, 0
      %v2774 = vmax.bf16 %v2742, 0
      %v2775 = vmax.bf16 %v2743, 0
      %v2776 = vmax.bf16 %v2744, 0
      %v2777 = vmax.bf16 %v2745, 0
      %v2778 = vmax.bf16 %v2746, 0
      %v2779 = vmax.bf16 %v2747, 0
      %v2780 = vmax.bf16 %v2748, 0
      %v2781 = vmax.bf16 %v2749, 0
      %v2782 = vmax.bf16 %v2750, 0
      %v2783 = vmax.bf16 %v2751, 0
      %v2784 = vmax.bf16 %v2752, 0
      %v2785 = vmax.bf16 %v2753, 0
      %v2786 = vmax.bf16 %v2754, 0
      %v2787 = vmax.bf16 %v2755, 0
      %v2788 = vmax.bf16 %v2756, 0
      %v2789 = vmax.bf16 %v2757, 0
      %v2790 = vmax.bf16 %v2758, 0
      %v2791 = vld [vmem:[%s6] sm:$0x3]
      %2793 = vset.pattern.permute.xlu0 4
      %2794 = vperm.xlu0 %2793, %v369
      %v2795 = vpop.permute.xlu0 %2794
      %v2799 = vunpack.c.l.s4 1966171168
      %v2800 = vunpack.c.0.s8 %v2799
      %v2801 = vlaneseq
      %v2802 = vshrl.u32 %v2801, 7
      %v2803 = vsub.s32 %v2800, %v2802
      %v2804 = vrot.slane %v2791, %v2803
      %v2805 = vcombine.high %v2804, %v2804
      %v2807 = vunpack.c.l.s4 1966171168
      %v2808 = vunpack.c.0.s8 %v2807
      %v2809 = vlaneseq
      %v2810 = vshrl.u32 %v2809, 7
      %v2811 = vsub.s32 %v2808, %v2810
      %v2812 = vrot.slane %v2804, %v2811
      %v2814 = vunpack.c.l.s4 1966171168
      %v2815 = vunpack.c.0.s8 %v2814
      %v2816 = vlaneseq
      %v2817 = vshrl.u32 %v2816, 7
      %v2818 = vsub.s32 %v2815, %v2817
      %v2819 = vrot.slane %v2805, %v2818
      %2822 = vmatprep.subr.bf16.mxu0 %v2760
      %2823 = vmatpush1.bf16.msra.mxu0 %v2759
      %2824 = vmatprep.subr.bf16.mxu0 %v2762
      %2825 = vmatpush1.bf16.msra.mxu0 %v2761
      %2826 = vmatprep.subr.bf16.mxu0 %v2764
      %2827 = vmatpush1.bf16.msra.mxu0 %v2763
      %2828 = vmatprep.subr.bf16.mxu0 %v2766
      %2829 = vmatpush1.bf16.msra.mxu0 %v2765
      %2830 = vmatprep.subr.bf16.mxu0 %v2768
      %2831 = vmatpush1.bf16.msra.mxu0 %v2767
      %2832 = vmatprep.subr.bf16.mxu0 %v2770
      %2833 = vmatpush1.bf16.msra.mxu0 %v2769
      %2834 = vmatprep.subr.bf16.mxu0 %v2772
      %2835 = vmatpush1.bf16.msra.mxu0 %v2771
      %2836 = vmatprep.subr.bf16.mxu0 %v2774
      %2837 = vmatpush1.bf16.msra.mxu0 %v2773
      %2838 = vmatprep.subr.bf16.mxu0 %v2776
      %2839 = vmatpush1.bf16.msra.mxu0 %v2775
      %2840 = vmatprep.subr.bf16.mxu0 %v2778
      %2841 = vmatpush1.bf16.msra.mxu0 %v2777
      %2842 = vmatprep.subr.bf16.mxu0 %v2780
      %2843 = vmatpush1.bf16.msra.mxu0 %v2779
      %2844 = vmatprep.subr.bf16.mxu0 %v2782
      %2845 = vmatpush1.bf16.msra.mxu0 %v2781
      %2846 = vmatprep.subr.bf16.mxu0 %v2784
      %2847 = vmatpush1.bf16.msra.mxu0 %v2783
      %2848 = vmatprep.subr.bf16.mxu0 %v2786
      %2849 = vmatpush1.bf16.msra.mxu0 %v2785
      %2850 = vmatprep.subr.bf16.mxu0 %v2788
      %2851 = vmatpush1.bf16.msra.mxu0 %v2787
      %2852 = vmatprep.subr.bf16.mxu0 %v2790
      %2853 = vmatpush1.bf16.msra.mxu0 %v2789
      %2854 = vmatprep.mubr.bf16.mxu0 %v2819
      %2855 = vmatmul.mubr.bf16.gmra.mrb[0].mxu0 %v2812
      %v2856 = vpop.f32.mrb[0].mxu0
      %v2857 = vadd.f32 %v2795, %v2856
      %v2858 = vpop.f32.mrb[0].mxu0
      %v2859 = vadd.f32 %v2795, %v2858
      %v2860 = vpop.f32.mrb[0].mxu0
      %v2861 = vpop.f32.mrb[0].mxu0
      %2862 = vdwg.mxu0
      %v2865 = vcombine.low %v2857, %v2859
      %v2867 = vunpack.c.l.s4 1966171168
      %v2868 = vunpack.c.0.s8 %v2867
      %v2869 = vlaneseq
      %v2870 = vshrl.u32 %v2869, 7
      %v2871 = vsub.s32 %v2868, %v2870
      %v2872 = vrot.slane %v2865, %v2871
      %v2874 = vunpack.c.l.s4 1966171168
      %v2875 = vunpack.c.0.s8 %v2874
      %v2876 = vlaneseq
      %v2877 = vshrl.u32 %v2876, 7
      %v2878 = vsub.s32 %v2875, %v2877
      %v2879 = vrot.slane %v2872, %v2878
      %v2881 = vlaneseq
      %vm2882 = vcmp.ge.s32.totalorder %v2881, 0
      %vm2883 = vcmp.lt.s32.totalorder %v2881, 256
      %vm2884 = vmand %vm2882, %vm2883
      %2885 = vst.msk [vmem:[%s334] sm:$0x3] %vm2884, %v2879
      %s2886 = smul.u32 2, %s23
      %p2887 = scmp.lt.s32.totalorder %s22, 1
      %s2888 = scalar_select %p2887, %s22, 1
      %p2889 = scmp.lt.s32.totalorder %s2886, 1
      %s2890 = scalar_select %p2889, %s2886, 1
      %s2891 = smul.addr %s2888, 2
      %s2892 = sadd.s32 %s2890, %s2891
      %s2893 = scalar_lea.vmem %s7, %s2892
      // Predicated region
      $region49: #{_lambda_.1} parent=47 // pred_check
        %p2894 = pneg %p209
      $region50: #{_lambda_.1} parent=47 // pred_check_branch
        %2896 = sbr.rel (%p2894) target = $region52
      $region51: #{_lambda_.1} parent=47 // pred_region
        %s2897 = smul.u32 2, %s23
      $region52: #{_lambda_.1} parent=47 // pred_fallthru
        _
    $region48: #{_lambda_.1} parent=5 // pred_fallthru
      _
    %p2898 = scmp.le.s32.totalorder 2, %s13
    // Predicated region
    $region53: #{_lambda_.1} parent=5 // pred_check
      %p2899 = pneg %p2898
    $region54: #{_lambda_.1} parent=5 // pred_check_branch
      %2901 = sbr.rel (%p2899) target = $region56
    $region55: #{_lambda_.1} parent=5 // pred_region
      %s2902 = ssub.s32 %s13, 2
      // Predicated region
      $region57: #{_lambda_.1} parent=55 // pred_check
        %p2903 = pneg %p215
      $region58: #{_lambda_.1} parent=55 // pred_check_branch
        %2905 = sbr.rel (%p2903) target = $region60
      $region59: #{_lambda_.1} parent=55 // pred_region
        %s2906 = smul.u32 2, %s25
        %p2907 = scmp.lt.s32.totalorder %s24, 1
        %s2908 = scalar_select %p2907, %s24, 1
        %p2909 = scmp.lt.s32.totalorder %s2906, 1
        %s2910 = scalar_select %p2909, %s2906, 1
        %s2911 = smul.addr %s2908, 2
        %s2912 = sadd.s32 %s2910, %s2911
        %s2913 = scalar_lea.vmem %s7, %s2912
      $region60: #{_lambda_.1} parent=55 // pred_fallthru
        _
    $region56: #{_lambda_.1} parent=5 // pred_fallthru
      _
  $region6: #{_lambda_.1} parent=0 // loop_footer
    %s17 = sadd.s32 1, %s13
  $region7: #{_lambda_.1} parent=0 // loop_footer_branch
    %12 = sbr.rel target = $region3
  $region8: #{_lambda_.1} parent=0 // loop_exit
    _

</llo_original>
